<compile_context>
chip_gen: v6e
topology: v6e:2x2x1
jax: 0.10.0
libtpu: 0.0.40
codegen_flags: <defaults>
</compile_context>

<pallas_src>
import jax
import jax.numpy as jnp
from jax import lax
from jax.experimental import pallas as pl
from jax.experimental.pallas import tpu as pltpu


# ----------------------------------------------------------------------------
# Pallas kernels
# ----------------------------------------------------------------------------
def _conv_pool_relu_kernel(p_ref, w_ref, b_ref, o_ref):
    # p: [TB, 4, S, K]  (4 = 2x2 pooling phases, S = pooled spatial, K = padded taps)
    # w: [K, 128]   b: [1, 1, 128]   o: [TB, S, 128]
    TB, Q, S, K = p_ref.shape
    N = w_ref.shape[1]
    y = jnp.dot(p_ref[...].reshape(TB * Q * S, K), w_ref[...],
                preferred_element_type=jnp.float32)
    y = y.reshape(TB, Q, S, N)
    # 2x2 max-pool over the 4 phases (bias is per-channel -> add after the max)
    m = jnp.maximum(jnp.maximum(y[:, 0], y[:, 1]), jnp.maximum(y[:, 2], y[:, 3]))
    o_ref[...] = jnp.maximum(m + b_ref[...], 0.0).astype(o_ref.dtype)


def _matmul_bias_kernel(a_ref, w_ref, b_ref, o_ref):
    # a: [M, K]  w: [K, 128]  b: [1, 128]  ->  o: [M, 128]
    acc = jnp.dot(a_ref[...], w_ref[...], preferred_element_type=jnp.float32)
    o_ref[...] = (acc + b_ref[...]).astype(o_ref.dtype)


# ----------------------------------------------------------------------------
# pallas_call wrappers
# ----------------------------------------------------------------------------
def _batch_tile(b, max_tile=8):
    t = min(b, max_tile)
    while b % t:
        t -= 1
    return t


def _row_tile(m, max_tile=512):
    if m <= max_tile:
        return m
    t = max_tile - max_tile % 8
    while t >= 8:
        if m % t == 0:
            return t
        t -= 8
    return m


def conv_pool_relu(patches, w, b, *, batch_tile):
    # patches: [B, 4, S, K]  -> pooled+ReLU'd activation [B, S, 128]
    B, Q, S, K = patches.shape
    N = w.shape[1]
    return pl.pallas_call(
        _conv_pool_relu_kernel,
        out_shape=jax.ShapeDtypeStruct((B, S, N), jnp.float32),
        grid_spec=pltpu.PrefetchScalarGridSpec(
            num_scalar_prefetch=0,
            grid=(B // batch_tile,),
            in_specs=[
                pl.BlockSpec((batch_tile, Q, S, K), lambda i: (i, 0, 0, 0)),
                pl.BlockSpec((K, N), lambda i: (0, 0)),
                pl.BlockSpec((1, 1, N), lambda i: (0, 0, 0)),
            ],
            out_specs=pl.BlockSpec((batch_tile, S, N), lambda i: (i, 0, 0)),
        ),
        compiler_params=pltpu.CompilerParams(dimension_semantics=("parallel",)),
    )(patches, w, b)


def matmul_bias(a, w, b, *, row_tile):
    M, K = a.shape
    N = w.shape[1]
    return pl.pallas_call(
        _matmul_bias_kernel,
        out_shape=jax.ShapeDtypeStruct((M, N), jnp.float32),
        grid_spec=pltpu.PrefetchScalarGridSpec(
            num_scalar_prefetch=0,
            grid=(M // row_tile,),
            in_specs=[
                pl.BlockSpec((row_tile, K), lambda i: (i, 0)),
                pl.BlockSpec((K, N), lambda i: (0, 0)),
                pl.BlockSpec((1, N), lambda i: (0, 0)),
            ],
            out_specs=pl.BlockSpec((row_tile, N), lambda i: (i, 0)),
        ),
        compiler_params=pltpu.CompilerParams(dimension_semantics=("parallel",)),
    )(a, w, b)


# ----------------------------------------------------------------------------
# XLA glue: phase-grouped im2col (torch weight flatten order: c-major, ki, kj)
# ----------------------------------------------------------------------------
def im2col_pool_phases(x, k):
    # x: [B, H, W, C] -> [B, 4, Hp*Wp, C*k*k], phases q = dh*2 + dw of the 2x2 pool
    B, H, W, C = x.shape
    Ho, Wo = H - k + 1, W - k + 1
    Hp, Wp = Ho // 2, Wo // 2
    taps = []
    for ki in range(k):
        for kj in range(k):
            taps.append(x[:, ki:ki + Ho, kj:kj + Wo, :])            # [B,Ho,Wo,C]
    pat = jnp.stack(taps, axis=3)                                   # [B,Ho,Wo,k*k,C]
    pat = jnp.transpose(pat, (0, 1, 2, 4, 3)).reshape(B, Ho, Wo, C * k * k)
    ph = jnp.stack([pat[:, 0::2, 0::2], pat[:, 0::2, 1::2],
                    pat[:, 1::2, 0::2], pat[:, 1::2, 1::2]], axis=1)  # [B,4,Hp,Wp,K]
    return ph.reshape(B, 4, Hp * Wp, C * k * k)


def _pad_last(x, k):
    pad = k - x.shape[-1]
    if pad == 0:
        return x
    return jnp.pad(x, [(0, 0)] * (x.ndim - 1) + [(0, pad)])


# ----------------------------------------------------------------------------
# Parameter packing (done once): pad channels to 128 lanes, K to 32/256,
# and fold the NCHW-flatten permutation into the FC weight.
# ----------------------------------------------------------------------------
def prepare_params(params):
    w1, b1, w2, b2, fcw, fcb = params
    f32 = jnp.float32
    w1p = jnp.zeros((32, 128), f32).at[:25, :10].set(w1.reshape(10, 25).T)
    b1p = jnp.zeros((1, 1, 128), f32).at[0, 0, :10].set(b1)
    w2p = jnp.zeros((256, 128), f32).at[:250, :20].set(w2.reshape(20, 250).T)
    b2p = jnp.zeros((1, 1, 128), f32).at[0, 0, :20].set(b2)
    # torch flat index = c*16 + s (s = h*4 + w); our activation flat index = s*128 + c.
    fcw_sco = jnp.transpose(fcw.reshape(10, 20, 16), (2, 1, 0))     # [s, c, o]
    wfcp = (jnp.zeros((16, 128, 128), f32).at[:, :20, :10].set(fcw_sco)
            .reshape(16 * 128, 128))
    bfcp = jnp.zeros((1, 128), f32).at[0, :10].set(fcb)
    return (w1p, b1p, w2p, b2p, wfcp, bfcp)


# ----------------------------------------------------------------------------
# Net forward (Pallas-backed)
# ----------------------------------------------------------------------------
def net_forward(x_nchw, packed):
    w1p, b1p, w2p, b2p, wfcp, bfcp = packed
    B = x_nchw.shape[0]
    tb = _batch_tile(B)

    # conv1 (1->10, k=5) + bias + pool 2x2 + relu, fused
    x = jnp.transpose(x_nchw, (0, 2, 3, 1))                     # [B,28,28,1]
    p1 = _pad_last(im2col_pool_phases(x, 5), 32)                # [B,4,144,32]
    a1 = conv_pool_relu(p1, w1p, b1p, batch_tile=tb)            # [B,144,128]

    # conv2 (10->20, k=5) + bias + pool 2x2 + relu, fused
    a1_img = a1.reshape(B, 12, 12, 128)[:, :, :, :10]           # [B,12,12,10]
    p2 = _pad_last(im2col_pool_phases(a1_img, 5), 256)          # [B,4,16,256]
    a2 = conv_pool_relu(p2, w2p, b2p, batch_tile=tb)            # [B,16,128]

    # fc (320 -> 10): permutation folded into wfcp, so just flatten the padded act.
    flat = a2.reshape(B, 16 * 128)                              # [B,2048]
    out = matmul_bias(flat, wfcp, bfcp, row_tile=_row_tile(B))  # [B,128]
    return out[:, :10]


# ----------------------------------------------------------------------------
# Pure-JAX (XLA) reference, torch semantics
# ----------------------------------------------------------------------------
def net_reference(x, params):
    w1, b1, w2, b2, fcw, fcb = params

    def conv(z, w, b):
        y = lax.conv_general_dilated(
            z, w, (1, 1), "VALID", dimension_numbers=("NCHW", "OIHW", "NCHW"))
        return y + b[None, :, None, None]

    def pool_relu(z):
        z = lax.reduce_window(z, -jnp.inf, lax.max, (1, 1, 2, 2), (1, 1, 2, 2), "VALID")
        return jnp.maximum(z, 0.0)

    y = pool_relu(conv(x, w1, b1))
    y = pool_relu(conv(y, w2, b2))
    y = y.reshape(x.shape[0], -1)
    return y @ fcw.T + fcb


def init_params():
    keys = jax.random.split(jax.random.PRNGKey(42), 6)
    w1 = 0.1 * jax.random.normal(keys[0], (10, 1, 5, 5), jnp.float32)
    b1 = 0.1 * jax.random.normal(keys[1], (10,), jnp.float32)
    w2 = 0.1 * jax.random.normal(keys[2], (20, 10, 5, 5), jnp.float32)
    b2 = 0.1 * jax.random.normal(keys[3], (20,), jnp.float32)
    fcw = 0.05 * jax.random.normal(keys[4], (10, 320), jnp.float32)
    fcb = 0.05 * jax.random.normal(keys[5], (10,), jnp.float32)
    return (w1, b1, w2, b2, fcw, fcb)


if __name__ == "__main__":
    params = init_params()
    packed = prepare_params(params)
    x = jax.random.normal(jax.random.PRNGKey(0), (2, 1, 28, 28), jnp.float32)

    fwd = jax.jit(net_forward)
    out = jax.block_until_ready(fwd(x, packed))

    ref = jax.block_until_ready(net_reference(x, params))
    assert out.shape == (2, 10), out.shape
    assert jnp.allclose(out, ref, rtol=1e-3, atol=1e-3), (
        f"max abs diff: {jnp.max(jnp.abs(out - ref))}")

    print("KERNEL_OK")
</pallas_src>

<mosaic_0001>
module attributes {stable_mosaic.version = 11 : i64} {
  func.func @_conv_pool_relu_kernel(%arg0: i32, %arg1: memref<2x4x144x32xf32, #tpu.memory_space<vmem>>, %arg2: memref<32x128xf32, #tpu.memory_space<vmem>>, %arg3: memref<1x1x128xf32, #tpu.memory_space<vmem>>, %arg4: memref<2x144x128xf32, #tpu.memory_space<vmem>>) attributes {dimension_semantics = [#tpu.dimension_semantics<parallel>], iteration_bounds = array<i64: 1>, scalar_prefetch = 0 : i64, scratch_operands = 0 : i64, tpu.core_type = #tpu.core_type<tc>, window_params = [{transform_indices = @transform_0, window_bounds = array<i64: 2, 4, 144, 32>}, {pipeline_mode = #tpu.pipeline_mode<synchronous>, transform_indices = @transform_1, window_bounds = array<i64: 32, 128>}, {pipeline_mode = #tpu.pipeline_mode<synchronous>, transform_indices = @transform_2, window_bounds = array<i64: 1, 1, 128>}, {transform_indices = @transform_3, window_bounds = array<i64: 2, 144, 128>}]} {
    %c0 = arith.constant 0 : index
    %c0_0 = arith.constant 0 : index
    %c0_1 = arith.constant 0 : index
    %c0_2 = arith.constant 0 : index
    %0 = vector.load %arg1[%c0, %c0_0, %c0_1, %c0_2] : memref<2x4x144x32xf32, #tpu.memory_space<vmem>>, vector<2x4x144x32xf32>
    %1 = vector.shape_cast %0 : vector<2x4x144x32xf32> to vector<1152x32xf32>
    %c0_3 = arith.constant 0 : index
    %c0_4 = arith.constant 0 : index
    %2 = vector.load %arg2[%c0_3, %c0_4] : memref<32x128xf32, #tpu.memory_space<vmem>>, vector<32x128xf32>
    %cst = arith.constant dense<0.000000e+00> : vector<1152x128xf32>
    %3 = tpu.matmul %1, %2, %cst {dimension_numbers = #tpu.dot_dimension_numbers<[1], [0], [0], [1], [0, 0, 1, 1], [], []>} : vector<1152x32xf32>, vector<32x128xf32>, vector<1152x128xf32> -> vector<1152x128xf32>
    %4 = vector.shape_cast %3 : vector<1152x128xf32> to vector<2x4x144x128xf32>
    %5 = vector.extract_strided_slice %4 {offsets = [0, 0, 0, 0], sizes = [2, 1, 144, 128], strides = [1, 1, 1, 1]} : vector<2x4x144x128xf32> to vector<2x1x144x128xf32>
    %6 = vector.shape_cast %5 : vector<2x1x144x128xf32> to vector<2x144x128xf32>
    %7 = vector.extract_strided_slice %4 {offsets = [0, 1, 0, 0], sizes = [2, 1, 144, 128], strides = [1, 1, 1, 1]} : vector<2x4x144x128xf32> to vector<2x1x144x128xf32>
    %8 = vector.shape_cast %7 : vector<2x1x144x128xf32> to vector<2x144x128xf32>
    %9 = arith.maximumf %6, %8 : vector<2x144x128xf32>
    %10 = vector.extract_strided_slice %4 {offsets = [0, 2, 0, 0], sizes = [2, 1, 144, 128], strides = [1, 1, 1, 1]} : vector<2x4x144x128xf32> to vector<2x1x144x128xf32>
    %11 = vector.shape_cast %10 : vector<2x1x144x128xf32> to vector<2x144x128xf32>
    %12 = vector.extract_strided_slice %4 {offsets = [0, 3, 0, 0], sizes = [2, 1, 144, 128], strides = [1, 1, 1, 1]} : vector<2x4x144x128xf32> to vector<2x1x144x128xf32>
    %13 = vector.shape_cast %12 : vector<2x1x144x128xf32> to vector<2x144x128xf32>
    %14 = arith.maximumf %11, %13 : vector<2x144x128xf32>
    %15 = arith.maximumf %9, %14 : vector<2x144x128xf32>
    %c0_5 = arith.constant 0 : index
    %c0_6 = arith.constant 0 : index
    %c0_7 = arith.constant 0 : index
    %16 = vector.load %arg3[%c0_5, %c0_6, %c0_7] : memref<1x1x128xf32, #tpu.memory_space<vmem>>, vector<1x1x128xf32>
    %17 = vector.broadcast %16 : vector<1x1x128xf32> to vector<2x144x128xf32>
    %18 = arith.addf %15, %17 : vector<2x144x128xf32>
    %cst_8 = arith.constant 0.000000e+00 : f32
    %19 = vector.broadcast %cst_8 : f32 to vector<2x144x128xf32>
    %20 = arith.maximumf %18, %19 : vector<2x144x128xf32>
    %c0_9 = arith.constant 0 : index
    %c0_10 = arith.constant 0 : index
    %c0_11 = arith.constant 0 : index
    %21 = vector.load %arg4[%c0_9, %c0_10, %c0_11] : memref<2x144x128xf32, #tpu.memory_space<vmem>>, vector<2x144x128xf32>
    tpu.vector_store %arg4[%c0_9, %c0_10, %c0_11], %20 {strides = array<i32>} : memref<2x144x128xf32, #tpu.memory_space<vmem>>, vector<2x144x128xf32>,
    return
  }
  func.func @transform_0(%arg0: i32) -> (i32, i32, i32, i32) {
    %c0_i32 = arith.constant 0 : i32
    %c0_i32_0 = arith.constant 0 : i32
    %c0_i32_1 = arith.constant 0 : i32
    %c0_i32_2 = arith.constant 0 : i32
    return %arg0, %c0_i32, %c0_i32_0, %c0_i32_1 : i32, i32, i32, i32
  }
  func.func @transform_1(%arg0: i32) -> (i32, i32) {
    %c0_i32 = arith.constant 0 : i32
    %c0_i32_0 = arith.constant 0 : i32
    %c0_i32_1 = arith.constant 0 : i32
    return %c0_i32, %c0_i32_0 : i32, i32
  }
  func.func @transform_2(%arg0: i32) -> (i32, i32, i32) {
    %c0_i32 = arith.constant 0 : i32
    %c0_i32_0 = arith.constant 0 : i32
    %c0_i32_1 = arith.constant 0 : i32
    %c0_i32_2 = arith.constant 0 : i32
    return %c0_i32, %c0_i32_0, %c0_i32_1 : i32, i32, i32
  }
  func.func @transform_3(%arg0: i32) -> (i32, i32, i32) {
    %c0_i32 = arith.constant 0 : i32
    %c0_i32_0 = arith.constant 0 : i32
    %c0_i32_1 = arith.constant 0 : i32
    return %arg0, %c0_i32, %c0_i32_0 : i32, i32, i32
  }
}

module attributes {stable_mosaic.version = 11 : i64} {
  func.func @_conv_pool_relu_kernel(%arg0: i32, %arg1: memref<2x4x16x256xf32, #tpu.memory_space<vmem>>, %arg2: memref<256x128xf32, #tpu.memory_space<vmem>>, %arg3: memref<1x1x128xf32, #tpu.memory_space<vmem>>, %arg4: memref<2x16x128xf32, #tpu.memory_space<vmem>>) attributes {dimension_semantics = [#tpu.dimension_semantics<parallel>], iteration_bounds = array<i64: 1>, scalar_prefetch = 0 : i64, scratch_operands = 0 : i64, tpu.core_type = #tpu.core_type<tc>, window_params = [{transform_indices = @transform_0, window_bounds = array<i64: 2, 4, 16, 256>}, {pipeline_mode = #tpu.pipeline_mode<synchronous>, transform_indices = @transform_1, window_bounds = array<i64: 256, 128>}, {pipeline_mode = #tpu.pipeline_mode<synchronous>, transform_indices = @transform_2, window_bounds = array<i64: 1, 1, 128>}, {transform_indices = @transform_3, window_bounds = array<i64: 2, 16, 128>}]} {
    %c0 = arith.constant 0 : index
    %c0_0 = arith.constant 0 : index
    %c0_1 = arith.constant 0 : index
    %c0_2 = arith.constant 0 : index
    %0 = vector.load %arg1[%c0, %c0_0, %c0_1, %c0_2] : memref<2x4x16x256xf32, #tpu.memory_space<vmem>>, vector<2x4x16x256xf32>
    %1 = vector.shape_cast %0 : vector<2x4x16x256xf32> to vector<128x256xf32>
    %c0_3 = arith.constant 0 : index
    %c0_4 = arith.constant 0 : index
    %2 = vector.load %arg2[%c0_3, %c0_4] : memref<256x128xf32, #tpu.memory_space<vmem>>, vector<256x128xf32>
    %cst = arith.constant dense<0.000000e+00> : vector<128x128xf32>
    %3 = tpu.matmul %1, %2, %cst {dimension_numbers = #tpu.dot_dimension_numbers<[1], [0], [0], [1], [0, 0, 1, 1], [], []>} : vector<128x256xf32>, vector<256x128xf32>, vector<128x128xf32> -> vector<128x128xf32>
    %4 = vector.shape_cast %3 : vector<128x128xf32> to vector<2x4x16x128xf32>
    %5 = vector.extract_strided_slice %4 {offsets = [0, 0, 0, 0], sizes = [2, 1, 16, 128], strides = [1, 1, 1, 1]} : vector<2x4x16x128xf32> to vector<2x1x16x128xf32>
    %6 = vector.shape_cast %5 : vector<2x1x16x128xf32> to vector<2x16x128xf32>
    %7 = vector.extract_strided_slice %4 {offsets = [0, 1, 0, 0], sizes = [2, 1, 16, 128], strides = [1, 1, 1, 1]} : vector<2x4x16x128xf32> to vector<2x1x16x128xf32>
    %8 = vector.shape_cast %7 : vector<2x1x16x128xf32> to vector<2x16x128xf32>
    %9 = arith.maximumf %6, %8 : vector<2x16x128xf32>
    %10 = vector.extract_strided_slice %4 {offsets = [0, 2, 0, 0], sizes = [2, 1, 16, 128], strides = [1, 1, 1, 1]} : vector<2x4x16x128xf32> to vector<2x1x16x128xf32>
    %11 = vector.shape_cast %10 : vector<2x1x16x128xf32> to vector<2x16x128xf32>
    %12 = vector.extract_strided_slice %4 {offsets = [0, 3, 0, 0], sizes = [2, 1, 16, 128], strides = [1, 1, 1, 1]} : vector<2x4x16x128xf32> to vector<2x1x16x128xf32>
    %13 = vector.shape_cast %12 : vector<2x1x16x128xf32> to vector<2x16x128xf32>
    %14 = arith.maximumf %11, %13 : vector<2x16x128xf32>
    %15 = arith.maximumf %9, %14 : vector<2x16x128xf32>
    %c0_5 = arith.constant 0 : index
    %c0_6 = arith.constant 0 : index
    %c0_7 = arith.constant 0 : index
    %16 = vector.load %arg3[%c0_5, %c0_6, %c0_7] : memref<1x1x128xf32, #tpu.memory_space<vmem>>, vector<1x1x128xf32>
    %17 = vector.broadcast %16 : vector<1x1x128xf32> to vector<2x16x128xf32>
    %18 = arith.addf %15, %17 : vector<2x16x128xf32>
    %cst_8 = arith.constant 0.000000e+00 : f32
    %19 = vector.broadcast %cst_8 : f32 to vector<2x16x128xf32>
    %20 = arith.maximumf %18, %19 : vector<2x16x128xf32>
    %c0_9 = arith.constant 0 : index
    %c0_10 = arith.constant 0 : index
    %c0_11 = arith.constant 0 : index
    %21 = vector.load %arg4[%c0_9, %c0_10, %c0_11] : memref<2x16x128xf32, #tpu.memory_space<vmem>>, vector<2x16x128xf32>
    tpu.vector_store %arg4[%c0_9, %c0_10, %c0_11], %20 {strides = array<i32>} : memref<2x16x128xf32, #tpu.memory_space<vmem>>, vector<2x16x128xf32>,
    return
  }
  func.func @transform_0(%arg0: i32) -> (i32, i32, i32, i32) {
    %c0_i32 = arith.constant 0 : i32
    %c0_i32_0 = arith.constant 0 : i32
    %c0_i32_1 = arith.constant 0 : i32
    %c0_i32_2 = arith.constant 0 : i32
    return %arg0, %c0_i32, %c0_i32_0, %c0_i32_1 : i32, i32, i32, i32
  }
  func.func @transform_1(%arg0: i32) -> (i32, i32) {
    %c0_i32 = arith.constant 0 : i32
    %c0_i32_0 = arith.constant 0 : i32
    %c0_i32_1 = arith.constant 0 : i32
    return %c0_i32, %c0_i32_0 : i32, i32
  }
  func.func @transform_2(%arg0: i32) -> (i32, i32, i32) {
    %c0_i32 = arith.constant 0 : i32
    %c0_i32_0 = arith.constant 0 : i32
    %c0_i32_1 = arith.constant 0 : i32
    %c0_i32_2 = arith.constant 0 : i32
    return %c0_i32, %c0_i32_0, %c0_i32_1 : i32, i32, i32
  }
  func.func @transform_3(%arg0: i32) -> (i32, i32, i32) {
    %c0_i32 = arith.constant 0 : i32
    %c0_i32_0 = arith.constant 0 : i32
    %c0_i32_1 = arith.constant 0 : i32
    return %arg0, %c0_i32, %c0_i32_0 : i32, i32, i32
  }
}

module attributes {stable_mosaic.version = 11 : i64} {
  func.func @_matmul_bias_kernel(%arg0: i32, %arg1: memref<2x2048xf32, #tpu.memory_space<vmem>>, %arg2: memref<2048x128xf32, #tpu.memory_space<vmem>>, %arg3: memref<1x128xf32, #tpu.memory_space<vmem>>, %arg4: memref<2x128xf32, #tpu.memory_space<vmem>>) attributes {dimension_semantics = [#tpu.dimension_semantics<parallel>], iteration_bounds = array<i64: 1>, scalar_prefetch = 0 : i64, scratch_operands = 0 : i64, tpu.core_type = #tpu.core_type<tc>, window_params = [{transform_indices = @transform_0, window_bounds = array<i64: 2, 2048>}, {pipeline_mode = #tpu.pipeline_mode<synchronous>, transform_indices = @transform_1, window_bounds = array<i64: 2048, 128>}, {pipeline_mode = #tpu.pipeline_mode<synchronous>, transform_indices = @transform_2, window_bounds = array<i64: 1, 128>}, {transform_indices = @transform_3, window_bounds = array<i64: 2, 128>}]} {
    %c0 = arith.constant 0 : index
    %c0_0 = arith.constant 0 : index
    %0 = vector.load %arg1[%c0, %c0_0] : memref<2x2048xf32, #tpu.memory_space<vmem>>, vector<2x2048xf32>
    %c0_1 = arith.constant 0 : index
    %c0_2 = arith.constant 0 : index
    %1 = vector.load %arg2[%c0_1, %c0_2] : memref<2048x128xf32, #tpu.memory_space<vmem>>, vector<2048x128xf32>
    %cst = arith.constant dense<0.000000e+00> : vector<2x128xf32>
    %2 = tpu.matmul %0, %1, %cst {dimension_numbers = #tpu.dot_dimension_numbers<[1], [0], [0], [1], [0, 0, 1, 1], [], []>} : vector<2x2048xf32>, vector<2048x128xf32>, vector<2x128xf32> -> vector<2x128xf32>
    %c0_3 = arith.constant 0 : index
    %c0_4 = arith.constant 0 : index
    %3 = vector.load %arg3[%c0_3, %c0_4] : memref<1x128xf32, #tpu.memory_space<vmem>>, vector<1x128xf32>
    %4 = vector.broadcast %3 : vector<1x128xf32> to vector<2x128xf32>
    %5 = arith.addf %2, %4 : vector<2x128xf32>
    %c0_5 = arith.constant 0 : index
    %c0_6 = arith.constant 0 : index
    %6 = vector.load %arg4[%c0_5, %c0_6] : memref<2x128xf32, #tpu.memory_space<vmem>>, vector<2x128xf32>
    tpu.vector_store %arg4[%c0_5, %c0_6], %5 {strides = array<i32>} : memref<2x128xf32, #tpu.memory_space<vmem>>, vector<2x128xf32>,
    return
  }
  func.func @transform_0(%arg0: i32) -> (i32, i32) {
    %c0_i32 = arith.constant 0 : i32
    %c0_i32_0 = arith.constant 0 : i32
    return %arg0, %c0_i32 : i32, i32
  }
  func.func @transform_1(%arg0: i32) -> (i32, i32) {
    %c0_i32 = arith.constant 0 : i32
    %c0_i32_0 = arith.constant 0 : i32
    %c0_i32_1 = arith.constant 0 : i32
    return %c0_i32, %c0_i32_0 : i32, i32
  }
  func.func @transform_2(%arg0: i32) -> (i32, i32) {
    %c0_i32 = arith.constant 0 : i32
    %c0_i32_0 = arith.constant 0 : i32
    %c0_i32_1 = arith.constant 0 : i32
    return %c0_i32, %c0_i32_0 : i32, i32
  }
  func.func @transform_3(%arg0: i32) -> (i32, i32) {
    %c0_i32 = arith.constant 0 : i32
    %c0_i32_0 = arith.constant 0 : i32
    return %arg0, %c0_i32 : i32, i32
  }
}

</mosaic_0001>

<llo_original>
// kernel: net_forward.3
$region0: #{net_forward.3}
  #allocation0 [shape = 'u32[]', space=smem, size = 0x4, offset = 0x4, fixed_abs, tag = 'smem constant byte address 0x4 - core index']
  #allocation1 [shape = 'u32[144,128]{1,0:T(1,128)}', space=vmem, size = 0x12000, scoped, tag = 'internal scratch']
  %s0 = inlined_call_operand.vmem [shape: f32[2,4,144,32], index: 0, kind: input, shape index: {}]
  %s1 = inlined_call_operand.vmem [shape: f32[32,128], index: 1, kind: input, shape index: {}]
  %s2 = inlined_call_operand.vmem [shape: f32[1,1,128], index: 2, kind: input, shape index: {}]
  %s3 = inlined_call_operand.vmem [shape: f32[2,144,128], index: 3, kind: output, shape index: {}]
  %s4 = sld [smem:[#allocation0]]
  $region22: #{net_forward.3} parent=0
    _
  %s6 = ssub.s32 1, %s4
  %s7 = scalar_select 0, %s6, %s4
  // Predicated region
  $region2: #{net_forward.3} parent=0 // pred_check
    _
  $region3: #{net_forward.3} parent=0 // pred_check_branch
    %9 = sbr.rel (0) target = $region5
  $region4: #{net_forward.3} parent=0 // pred_region
    _
  $region5: #{net_forward.3} parent=0 // pred_fallthru
    _
  // Predicated region
  $region6: #{net_forward.3} parent=0 // pred_check
    _
  $region7: #{net_forward.3} parent=0 // pred_check_branch
    %11 = sbr.rel (0) target = $region9
  $region8: #{net_forward.3} parent=0 // pred_region
    _
  $region9: #{net_forward.3} parent=0 // pred_fallthru
    _
  // Predicated region
  $region10: #{net_forward.3} parent=0 // pred_check
    _
  $region11: #{net_forward.3} parent=0 // pred_check_branch
    %13 = sbr.rel (0) target = $region13
  $region12: #{net_forward.3} parent=0 // pred_region
    _
  $region13: #{net_forward.3} parent=0 // pred_fallthru
    _
  %v14 = vld [vmem:[%s0] sm:$0xff]
  %v15 = vld [vmem:[%s0 + $0x8] sm:$0xff]
  %v16 = vld [vmem:[%s0 + $0x10] sm:$0xff]
  %v17 = vld [vmem:[%s0 + $0x18] sm:$0xff]
  %v18 = vld [vmem:[%s0 + $0x20] sm:$0xff]
  %v19 = vld [vmem:[%s0 + $0x28] sm:$0xff]
  %v20 = vld [vmem:[%s0 + $0x30] sm:$0xff]
  %v21 = vld [vmem:[%s0 + $0x38] sm:$0xff]
  %v22 = vld [vmem:[%s0 + $0x40] sm:$0xff]
  %v23 = vld [vmem:[%s0 + $0x48] sm:$0xff]
  %v24 = vld [vmem:[%s0 + $0x50] sm:$0xff]
  %v25 = vld [vmem:[%s0 + $0x58] sm:$0xff]
  %v26 = vld [vmem:[%s0 + $0x60] sm:$0xff]
  %v27 = vld [vmem:[%s0 + $0x68] sm:$0xff]
  %v28 = vld [vmem:[%s0 + $0x70] sm:$0xff]
  %v29 = vld [vmem:[%s0 + $0x78] sm:$0xff]
  %v30 = vld [vmem:[%s0 + $0x80] sm:$0xff]
  %v31 = vld [vmem:[%s0 + $0x88] sm:$0xff]
  %v32 = vld [vmem:[%s0 + $0x90] sm:$0xff]
  %v33 = vld [vmem:[%s0 + $0x98] sm:$0xff]
  %v34 = vld [vmem:[%s0 + $0xa0] sm:$0xff]
  %v35 = vld [vmem:[%s0 + $0xa8] sm:$0xff]
  %v36 = vld [vmem:[%s0 + $0xb0] sm:$0xff]
  %v37 = vld [vmem:[%s0 + $0xb8] sm:$0xff]
  %v38 = vld [vmem:[%s0 + $0xc0] sm:$0xff]
  %v39 = vld [vmem:[%s0 + $0xc8] sm:$0xff]
  %v40 = vld [vmem:[%s0 + $0xd0] sm:$0xff]
  %v41 = vld [vmem:[%s0 + $0xd8] sm:$0xff]
  %v42 = vld [vmem:[%s0 + $0xe0] sm:$0xff]
  %v43 = vld [vmem:[%s0 + $0xe8] sm:$0xff]
  %v44 = vld [vmem:[%s0 + $0xf0] sm:$0xff]
  %v45 = vld [vmem:[%s0 + $0xf8] sm:$0xff]
  %v46 = vld [vmem:[%s0 + $0x100] sm:$0xff]
  %v47 = vld [vmem:[%s0 + $0x108] sm:$0xff]
  %v48 = vld [vmem:[%s0 + $0x110] sm:$0xff]
  %v49 = vld [vmem:[%s0 + $0x118] sm:$0xff]
  %v50 = vld [vmem:[%s0 + $0x120] sm:$0xff]
  %v51 = vld [vmem:[%s0 + $0x128] sm:$0xff]
  %v52 = vld [vmem:[%s0 + $0x130] sm:$0xff]
  %v53 = vld [vmem:[%s0 + $0x138] sm:$0xff]
  %v54 = vld [vmem:[%s0 + $0x140] sm:$0xff]
  %v55 = vld [vmem:[%s0 + $0x148] sm:$0xff]
  %v56 = vld [vmem:[%s0 + $0x150] sm:$0xff]
  %v57 = vld [vmem:[%s0 + $0x158] sm:$0xff]
  %v58 = vld [vmem:[%s0 + $0x160] sm:$0xff]
  %v59 = vld [vmem:[%s0 + $0x168] sm:$0xff]
  %v60 = vld [vmem:[%s0 + $0x170] sm:$0xff]
  %v61 = vld [vmem:[%s0 + $0x178] sm:$0xff]
  %v62 = vld [vmem:[%s0 + $0x180] sm:$0xff]
  %v63 = vld [vmem:[%s0 + $0x188] sm:$0xff]
  %v64 = vld [vmem:[%s0 + $0x190] sm:$0xff]
  %v65 = vld [vmem:[%s0 + $0x198] sm:$0xff]
  %v66 = vld [vmem:[%s0 + $0x1a0] sm:$0xff]
  %v67 = vld [vmem:[%s0 + $0x1a8] sm:$0xff]
  %v68 = vld [vmem:[%s0 + $0x1b0] sm:$0xff]
  %v69 = vld [vmem:[%s0 + $0x1b8] sm:$0xff]
  %v70 = vld [vmem:[%s0 + $0x1c0] sm:$0xff]
  %v71 = vld [vmem:[%s0 + $0x1c8] sm:$0xff]
  %v72 = vld [vmem:[%s0 + $0x1d0] sm:$0xff]
  %v73 = vld [vmem:[%s0 + $0x1d8] sm:$0xff]
  %v74 = vld [vmem:[%s0 + $0x1e0] sm:$0xff]
  %v75 = vld [vmem:[%s0 + $0x1e8] sm:$0xff]
  %v76 = vld [vmem:[%s0 + $0x1f0] sm:$0xff]
  %v77 = vld [vmem:[%s0 + $0x1f8] sm:$0xff]
  %v78 = vld [vmem:[%s0 + $0x200] sm:$0xff]
  %v79 = vld [vmem:[%s0 + $0x208] sm:$0xff]
  %v80 = vld [vmem:[%s0 + $0x210] sm:$0xff]
  %v81 = vld [vmem:[%s0 + $0x218] sm:$0xff]
  %v82 = vld [vmem:[%s0 + $0x220] sm:$0xff]
  %v83 = vld [vmem:[%s0 + $0x228] sm:$0xff]
  %v84 = vld [vmem:[%s0 + $0x230] sm:$0xff]
  %v85 = vld [vmem:[%s0 + $0x238] sm:$0xff]
  %v86 = vld [vmem:[%s0 + $0x240] sm:$0xff]
  %v87 = vld [vmem:[%s0 + $0x248] sm:$0xff]
  %v88 = vld [vmem:[%s0 + $0x250] sm:$0xff]
  %v89 = vld [vmem:[%s0 + $0x258] sm:$0xff]
  %v90 = vld [vmem:[%s0 + $0x260] sm:$0xff]
  %v91 = vld [vmem:[%s0 + $0x268] sm:$0xff]
  %v92 = vld [vmem:[%s0 + $0x270] sm:$0xff]
  %v93 = vld [vmem:[%s0 + $0x278] sm:$0xff]
  %v94 = vld [vmem:[%s0 + $0x280] sm:$0xff]
  %v95 = vld [vmem:[%s0 + $0x288] sm:$0xff]
  %v96 = vld [vmem:[%s0 + $0x290] sm:$0xff]
  %v97 = vld [vmem:[%s0 + $0x298] sm:$0xff]
  %v98 = vld [vmem:[%s0 + $0x2a0] sm:$0xff]
  %v99 = vld [vmem:[%s0 + $0x2a8] sm:$0xff]
  %v100 = vld [vmem:[%s0 + $0x2b0] sm:$0xff]
  %v101 = vld [vmem:[%s0 + $0x2b8] sm:$0xff]
  %v102 = vld [vmem:[%s0 + $0x2c0] sm:$0xff]
  %v103 = vld [vmem:[%s0 + $0x2c8] sm:$0xff]
  %v104 = vld [vmem:[%s0 + $0x2d0] sm:$0xff]
  %v105 = vld [vmem:[%s0 + $0x2d8] sm:$0xff]
  %v106 = vld [vmem:[%s0 + $0x2e0] sm:$0xff]
  %v107 = vld [vmem:[%s0 + $0x2e8] sm:$0xff]
  %v108 = vld [vmem:[%s0 + $0x2f0] sm:$0xff]
  %v109 = vld [vmem:[%s0 + $0x2f8] sm:$0xff]
  %v110 = vld [vmem:[%s0 + $0x300] sm:$0xff]
  %v111 = vld [vmem:[%s0 + $0x308] sm:$0xff]
  %v112 = vld [vmem:[%s0 + $0x310] sm:$0xff]
  %v113 = vld [vmem:[%s0 + $0x318] sm:$0xff]
  %v114 = vld [vmem:[%s0 + $0x320] sm:$0xff]
  %v115 = vld [vmem:[%s0 + $0x328] sm:$0xff]
  %v116 = vld [vmem:[%s0 + $0x330] sm:$0xff]
  %v117 = vld [vmem:[%s0 + $0x338] sm:$0xff]
  %v118 = vld [vmem:[%s0 + $0x340] sm:$0xff]
  %v119 = vld [vmem:[%s0 + $0x348] sm:$0xff]
  %v120 = vld [vmem:[%s0 + $0x350] sm:$0xff]
  %v121 = vld [vmem:[%s0 + $0x358] sm:$0xff]
  %v122 = vld [vmem:[%s0 + $0x360] sm:$0xff]
  %v123 = vld [vmem:[%s0 + $0x368] sm:$0xff]
  %v124 = vld [vmem:[%s0 + $0x370] sm:$0xff]
  %v125 = vld [vmem:[%s0 + $0x378] sm:$0xff]
  %v126 = vld [vmem:[%s0 + $0x380] sm:$0xff]
  %v127 = vld [vmem:[%s0 + $0x388] sm:$0xff]
  %v128 = vld [vmem:[%s0 + $0x390] sm:$0xff]
  %v129 = vld [vmem:[%s0 + $0x398] sm:$0xff]
  %v130 = vld [vmem:[%s0 + $0x3a0] sm:$0xff]
  %v131 = vld [vmem:[%s0 + $0x3a8] sm:$0xff]
  %v132 = vld [vmem:[%s0 + $0x3b0] sm:$0xff]
  %v133 = vld [vmem:[%s0 + $0x3b8] sm:$0xff]
  %v134 = vld [vmem:[%s0 + $0x3c0] sm:$0xff]
  %v135 = vld [vmem:[%s0 + $0x3c8] sm:$0xff]
  %v136 = vld [vmem:[%s0 + $0x3d0] sm:$0xff]
  %v137 = vld [vmem:[%s0 + $0x3d8] sm:$0xff]
  %v138 = vld [vmem:[%s0 + $0x3e0] sm:$0xff]
  %v139 = vld [vmem:[%s0 + $0x3e8] sm:$0xff]
  %v140 = vld [vmem:[%s0 + $0x3f0] sm:$0xff]
  %v141 = vld [vmem:[%s0 + $0x3f8] sm:$0xff]
  %v142 = vld [vmem:[%s0 + $0x400] sm:$0xff]
  %v143 = vld [vmem:[%s0 + $0x408] sm:$0xff]
  %v144 = vld [vmem:[%s0 + $0x410] sm:$0xff]
  %v145 = vld [vmem:[%s0 + $0x418] sm:$0xff]
  %v146 = vld [vmem:[%s0 + $0x420] sm:$0xff]
  %v147 = vld [vmem:[%s0 + $0x428] sm:$0xff]
  %v148 = vld [vmem:[%s0 + $0x430] sm:$0xff]
  %v149 = vld [vmem:[%s0 + $0x438] sm:$0xff]
  %v150 = vld [vmem:[%s0 + $0x440] sm:$0xff]
  %v151 = vld [vmem:[%s0 + $0x448] sm:$0xff]
  %v152 = vld [vmem:[%s0 + $0x450] sm:$0xff]
  %v153 = vld [vmem:[%s0 + $0x458] sm:$0xff]
  %v154 = vld [vmem:[%s0 + $0x460] sm:$0xff]
  %v155 = vld [vmem:[%s0 + $0x468] sm:$0xff]
  %v156 = vld [vmem:[%s0 + $0x470] sm:$0xff]
  %v157 = vld [vmem:[%s0 + $0x478] sm:$0xff]
  %v158 = vld [vmem:[%s1] sm:$0xff]
  %v159 = vld [vmem:[%s1 + $0x8] sm:$0xff]
  %v160 = vld [vmem:[%s1 + $0x10] sm:$0xff]
  %v161 = vld [vmem:[%s1 + $0x18] sm:$0xff]
  %vm162 = vcmask 261120
  %v164 = vsel %vm162, %v14, 0
  %v167 = vsel %vm162, %v15, 0
  %v170 = vsel %vm162, %v16, 0
  %v173 = vsel %vm162, %v17, 0
  %v176 = vsel %vm162, %v18, 0
  %v179 = vsel %vm162, %v19, 0
  %v182 = vsel %vm162, %v20, 0
  %v185 = vsel %vm162, %v21, 0
  %v188 = vsel %vm162, %v22, 0
  %v191 = vsel %vm162, %v23, 0
  %v194 = vsel %vm162, %v24, 0
  %v197 = vsel %vm162, %v25, 0
  %v200 = vsel %vm162, %v26, 0
  %v203 = vsel %vm162, %v27, 0
  %v206 = vsel %vm162, %v28, 0
  %v209 = vsel %vm162, %v29, 0
  %v212 = vsel %vm162, %v30, 0
  %v215 = vsel %vm162, %v31, 0
  %v218 = vsel %vm162, %v32, 0
  %v221 = vsel %vm162, %v33, 0
  %v224 = vsel %vm162, %v34, 0
  %v227 = vsel %vm162, %v35, 0
  %v230 = vsel %vm162, %v36, 0
  %v233 = vsel %vm162, %v37, 0
  %v236 = vsel %vm162, %v38, 0
  %v239 = vsel %vm162, %v39, 0
  %v242 = vsel %vm162, %v40, 0
  %v245 = vsel %vm162, %v41, 0
  %v248 = vsel %vm162, %v42, 0
  %v251 = vsel %vm162, %v43, 0
  %v254 = vsel %vm162, %v44, 0
  %v257 = vsel %vm162, %v45, 0
  %v260 = vsel %vm162, %v46, 0
  %v263 = vsel %vm162, %v47, 0
  %v266 = vsel %vm162, %v48, 0
  %v269 = vsel %vm162, %v49, 0
  %v272 = vsel %vm162, %v50, 0
  %v275 = vsel %vm162, %v51, 0
  %v278 = vsel %vm162, %v52, 0
  %v281 = vsel %vm162, %v53, 0
  %v284 = vsel %vm162, %v54, 0
  %v287 = vsel %vm162, %v55, 0
  %v290 = vsel %vm162, %v56, 0
  %v293 = vsel %vm162, %v57, 0
  %v296 = vsel %vm162, %v58, 0
  %v299 = vsel %vm162, %v59, 0
  %v302 = vsel %vm162, %v60, 0
  %v305 = vsel %vm162, %v61, 0
  %v308 = vsel %vm162, %v62, 0
  %v311 = vsel %vm162, %v63, 0
  %v314 = vsel %vm162, %v64, 0
  %v317 = vsel %vm162, %v65, 0
  %v320 = vsel %vm162, %v66, 0
  %v323 = vsel %vm162, %v67, 0
  %v326 = vsel %vm162, %v68, 0
  %v329 = vsel %vm162, %v69, 0
  %v332 = vsel %vm162, %v70, 0
  %v335 = vsel %vm162, %v71, 0
  %v338 = vsel %vm162, %v72, 0
  %v341 = vsel %vm162, %v73, 0
  %v344 = vsel %vm162, %v74, 0
  %v347 = vsel %vm162, %v75, 0
  %v350 = vsel %vm162, %v76, 0
  %v353 = vsel %vm162, %v77, 0
  %v356 = vsel %vm162, %v78, 0
  %v359 = vsel %vm162, %v79, 0
  %v362 = vsel %vm162, %v80, 0
  %v365 = vsel %vm162, %v81, 0
  %v368 = vsel %vm162, %v82, 0
  %v371 = vsel %vm162, %v83, 0
  %v374 = vsel %vm162, %v84, 0
  %v377 = vsel %vm162, %v85, 0
  %v380 = vsel %vm162, %v86, 0
  %v383 = vsel %vm162, %v87, 0
  %v386 = vsel %vm162, %v88, 0
  %v389 = vsel %vm162, %v89, 0
  %v392 = vsel %vm162, %v90, 0
  %v395 = vsel %vm162, %v91, 0
  %v398 = vsel %vm162, %v92, 0
  %v401 = vsel %vm162, %v93, 0
  %v404 = vsel %vm162, %v94, 0
  %v407 = vsel %vm162, %v95, 0
  %v410 = vsel %vm162, %v96, 0
  %v413 = vsel %vm162, %v97, 0
  %v416 = vsel %vm162, %v98, 0
  %v419 = vsel %vm162, %v99, 0
  %v422 = vsel %vm162, %v100, 0
  %v425 = vsel %vm162, %v101, 0
  %v428 = vsel %vm162, %v102, 0
  %v431 = vsel %vm162, %v103, 0
  %v434 = vsel %vm162, %v104, 0
  %v437 = vsel %vm162, %v105, 0
  %v440 = vsel %vm162, %v106, 0
  %v443 = vsel %vm162, %v107, 0
  %v446 = vsel %vm162, %v108, 0
  %v449 = vsel %vm162, %v109, 0
  %v452 = vsel %vm162, %v110, 0
  %v455 = vsel %vm162, %v111, 0
  %v458 = vsel %vm162, %v112, 0
  %v461 = vsel %vm162, %v113, 0
  %v464 = vsel %vm162, %v114, 0
  %v467 = vsel %vm162, %v115, 0
  %v470 = vsel %vm162, %v116, 0
  %v473 = vsel %vm162, %v117, 0
  %v476 = vsel %vm162, %v118, 0
  %v479 = vsel %vm162, %v119, 0
  %v482 = vsel %vm162, %v120, 0
  %v485 = vsel %vm162, %v121, 0
  %v488 = vsel %vm162, %v122, 0
  %v491 = vsel %vm162, %v123, 0
  %v494 = vsel %vm162, %v124, 0
  %v497 = vsel %vm162, %v125, 0
  %v500 = vsel %vm162, %v126, 0
  %v503 = vsel %vm162, %v127, 0
  %v506 = vsel %vm162, %v128, 0
  %v509 = vsel %vm162, %v129, 0
  %v512 = vsel %vm162, %v130, 0
  %v515 = vsel %vm162, %v131, 0
  %v518 = vsel %vm162, %v132, 0
  %v521 = vsel %vm162, %v133, 0
  %v524 = vsel %vm162, %v134, 0
  %v527 = vsel %vm162, %v135, 0
  %v530 = vsel %vm162, %v136, 0
  %v533 = vsel %vm162, %v137, 0
  %v536 = vsel %vm162, %v138, 0
  %v539 = vsel %vm162, %v139, 0
  %v542 = vsel %vm162, %v140, 0
  %v545 = vsel %vm162, %v141, 0
  %v548 = vsel %vm162, %v142, 0
  %v551 = vsel %vm162, %v143, 0
  %v554 = vsel %vm162, %v144, 0
  %v557 = vsel %vm162, %v145, 0
  %v560 = vsel %vm162, %v146, 0
  %v563 = vsel %vm162, %v147, 0
  %v566 = vsel %vm162, %v148, 0
  %v569 = vsel %vm162, %v149, 0
  %v572 = vsel %vm162, %v150, 0
  %v575 = vsel %vm162, %v151, 0
  %v578 = vsel %vm162, %v152, 0
  %v581 = vsel %vm162, %v153, 0
  %v584 = vsel %vm162, %v154, 0
  %v587 = vsel %vm162, %v155, 0
  %v590 = vsel %vm162, %v156, 0
  %v593 = vsel %vm162, %v157, 0
  %595 = vmatprep.subr.mxu0 0.0
  %596 = vmatpush1.msra.mxu0 0.0
  %597 = vmatprep.subr.mxu0 0.0
  %598 = vmatpush1.msra.mxu0 0.0
  %599 = vmatprep.subr.mxu0 0.0
  %600 = vmatpush1.msra.mxu0 0.0
  %601 = vmatprep.subr.mxu0 0.0
  %602 = vmatpush1.msra.mxu0 0.0
  %603 = vmatprep.subr.mxu0 0.0
  %604 = vmatpush1.msra.mxu0 0.0
  %605 = vmatprep.subr.mxu0 0.0
  %606 = vmatpush1.msra.mxu0 0.0
  %607 = vmatprep.subr.mxu0 0.0
  %608 = vmatpush1.msra.mxu0 0.0
  %609 = vmatprep.subr.mxu0 0.0
  %610 = vmatpush1.msra.mxu0 0.0
  %611 = vmatprep.subr.mxu0 0.0
  %612 = vmatpush1.msra.mxu0 0.0
  %613 = vmatprep.subr.mxu0 0.0
  %614 = vmatpush1.msra.mxu0 0.0
  %615 = vmatprep.subr.mxu0 0.0
  %616 = vmatpush1.msra.mxu0 0.0
  %617 = vmatprep.subr.mxu0 0.0
  %618 = vmatpush1.msra.mxu0 0.0
  %619 = vmatprep.subr.mxu0 0.0
  %620 = vmatpush1.msra.mxu0 %v161
  %621 = vmatprep.subr.mxu0 0.0
  %622 = vmatpush1.msra.mxu0 %v160
  %623 = vmatprep.subr.mxu0 0.0
  %624 = vmatpush1.msra.mxu0 %v159
  %625 = vmatprep.subr.mxu0 0.0
  %626 = vmatpush1.msra.mxu0 %v158
  %627 = vmatprep.subr.mxu0 0.0
  %628 = vmatpush2.msra.mxu0 0.0
  %629 = vmatprep.subr.mxu0 0.0
  %630 = vmatpush2.msra.mxu0 0.0
  %631 = vmatprep.subr.mxu0 0.0
  %632 = vmatpush2.msra.mxu0 0.0
  %633 = vmatprep.subr.mxu0 0.0
  %634 = vmatpush2.msra.mxu0 0.0
  %635 = vmatprep.subr.mxu0 0.0
  %636 = vmatpush2.msra.mxu0 0.0
  %637 = vmatprep.subr.mxu0 0.0
  %638 = vmatpush2.msra.mxu0 0.0
  %639 = vmatprep.subr.mxu0 0.0
  %640 = vmatpush2.msra.mxu0 0.0
  %641 = vmatprep.subr.mxu0 0.0
  %642 = vmatpush2.msra.mxu0 0.0
  %643 = vmatprep.subr.mxu0 0.0
  %644 = vmatpush2.msra.mxu0 0.0
  %645 = vmatprep.subr.mxu0 0.0
  %646 = vmatpush2.msra.mxu0 0.0
  %647 = vmatprep.subr.mxu0 0.0
  %648 = vmatpush2.msra.mxu0 0.0
  %649 = vmatprep.subr.mxu0 0.0
  %650 = vmatpush2.msra.mxu0 0.0
  %651 = vmatprep.subr.mxu0 0.0
  %652 = vmatpush2.msra.mxu0 0.0
  %653 = vmatprep.subr.mxu0 0.0
  %654 = vmatpush2.msra.mxu0 0.0
  %655 = vmatprep.subr.mxu0 0.0
  %656 = vmatpush2.msra.mxu0 0.0
  %657 = vmatprep.subr.mxu0 0.0
  %658 = vmatpush2.msra.mxu0 0.0
  %659 = vmatprep.mubr.f32.mxu0 0.0
  %660 = vmatmul.mubr.f32.gmra.mxu0 %v164
  %v661 = vpop.f32.mrf.mxu0
  %v662 = vadd.f32 0.0, %v661
  %v663 = vpop.f32.mrf.mxu0
  %664 = vmatprep.mubr.f32.mxu0 0.0
  %665 = vmatmul.mubr.f32.gmra.mxu0 %v167
  %v666 = vpop.f32.mrf.mxu0
  %v667 = vadd.f32 0.0, %v666
  %v668 = vpop.f32.mrf.mxu0
  %669 = vmatprep.mubr.f32.mxu0 0.0
  %670 = vmatmul.mubr.f32.gmra.mxu0 %v170
  %v671 = vpop.f32.mrf.mxu0
  %v672 = vadd.f32 0.0, %v671
  %v673 = vpop.f32.mrf.mxu0
  %674 = vmatprep.mubr.f32.mxu0 0.0
  %675 = vmatmul.mubr.f32.gmra.mxu0 %v173
  %v676 = vpop.f32.mrf.mxu0
  %v677 = vadd.f32 0.0, %v676
  %v678 = vpop.f32.mrf.mxu0
  %679 = vmatprep.mubr.f32.mxu0 0.0
  %680 = vmatmul.mubr.f32.gmra.mxu0 %v176
  %v681 = vpop.f32.mrf.mxu0
  %v682 = vadd.f32 0.0, %v681
  %v683 = vpop.f32.mrf.mxu0
  %684 = vmatprep.mubr.f32.mxu0 0.0
  %685 = vmatmul.mubr.f32.gmra.mxu0 %v179
  %v686 = vpop.f32.mrf.mxu0
  %v687 = vadd.f32 0.0, %v686
  %v688 = vpop.f32.mrf.mxu0
  %689 = vmatprep.mubr.f32.mxu0 0.0
  %690 = vmatmul.mubr.f32.gmra.mxu0 %v182
  %v691 = vpop.f32.mrf.mxu0
  %v692 = vadd.f32 0.0, %v691
  %v693 = vpop.f32.mrf.mxu0
  %694 = vmatprep.mubr.f32.mxu0 0.0
  %695 = vmatmul.mubr.f32.gmra.mxu0 %v185
  %v696 = vpop.f32.mrf.mxu0
  %v697 = vadd.f32 0.0, %v696
  %v698 = vpop.f32.mrf.mxu0
  %699 = vmatprep.mubr.f32.mxu0 0.0
  %700 = vmatmul.mubr.f32.gmra.mxu0 %v188
  %v701 = vpop.f32.mrf.mxu0
  %v702 = vadd.f32 0.0, %v701
  %v703 = vpop.f32.mrf.mxu0
  %704 = vmatprep.mubr.f32.mxu0 0.0
  %705 = vmatmul.mubr.f32.gmra.mxu0 %v191
  %v706 = vpop.f32.mrf.mxu0
  %v707 = vadd.f32 0.0, %v706
  %v708 = vpop.f32.mrf.mxu0
  %709 = vmatprep.mubr.f32.mxu0 0.0
  %710 = vmatmul.mubr.f32.gmra.mxu0 %v194
  %v711 = vpop.f32.mrf.mxu0
  %v712 = vadd.f32 0.0, %v711
  %v713 = vpop.f32.mrf.mxu0
  %714 = vmatprep.mubr.f32.mxu0 0.0
  %715 = vmatmul.mubr.f32.gmra.mxu0 %v197
  %v716 = vpop.f32.mrf.mxu0
  %v717 = vadd.f32 0.0, %v716
  %v718 = vpop.f32.mrf.mxu0
  %719 = vmatprep.mubr.f32.mxu0 0.0
  %720 = vmatmul.mubr.f32.gmra.mxu0 %v200
  %v721 = vpop.f32.mrf.mxu0
  %v722 = vadd.f32 0.0, %v721
  %v723 = vpop.f32.mrf.mxu0
  %724 = vmatprep.mubr.f32.mxu0 0.0
  %725 = vmatmul.mubr.f32.gmra.mxu0 %v203
  %v726 = vpop.f32.mrf.mxu0
  %v727 = vadd.f32 0.0, %v726
  %v728 = vpop.f32.mrf.mxu0
  %729 = vmatprep.mubr.f32.mxu0 0.0
  %730 = vmatmul.mubr.f32.gmra.mxu0 %v206
  %v731 = vpop.f32.mrf.mxu0
  %v732 = vadd.f32 0.0, %v731
  %v733 = vpop.f32.mrf.mxu0
  %734 = vmatprep.mubr.f32.mxu0 0.0
  %735 = vmatmul.mubr.f32.gmra.mxu0 %v209
  %v736 = vpop.f32.mrf.mxu0
  %v737 = vadd.f32 0.0, %v736
  %v738 = vpop.f32.mrf.mxu0
  %739 = vmatprep.mubr.f32.mxu0 0.0
  %740 = vmatmul.mubr.f32.gmra.mxu0 %v212
  %v741 = vpop.f32.mrf.mxu0
  %v742 = vadd.f32 0.0, %v741
  %v743 = vpop.f32.mrf.mxu0
  %744 = vmatprep.mubr.f32.mxu0 0.0
  %745 = vmatmul.mubr.f32.gmra.mxu0 %v215
  %v746 = vpop.f32.mrf.mxu0
  %v747 = vadd.f32 0.0, %v746
  %v748 = vpop.f32.mrf.mxu0
  %749 = vmatprep.mubr.f32.mxu0 0.0
  %750 = vmatmul.mubr.f32.gmra.mxu0 %v218
  %v751 = vpop.f32.mrf.mxu0
  %v752 = vadd.f32 0.0, %v751
  %v753 = vpop.f32.mrf.mxu0
  %754 = vmatprep.mubr.f32.mxu0 0.0
  %755 = vmatmul.mubr.f32.gmra.mxu0 %v221
  %v756 = vpop.f32.mrf.mxu0
  %v757 = vadd.f32 0.0, %v756
  %v758 = vpop.f32.mrf.mxu0
  %759 = vmatprep.mubr.f32.mxu0 0.0
  %760 = vmatmul.mubr.f32.gmra.mxu0 %v224
  %v761 = vpop.f32.mrf.mxu0
  %v762 = vadd.f32 0.0, %v761
  %v763 = vpop.f32.mrf.mxu0
  %764 = vmatprep.mubr.f32.mxu0 0.0
  %765 = vmatmul.mubr.f32.gmra.mxu0 %v227
  %v766 = vpop.f32.mrf.mxu0
  %v767 = vadd.f32 0.0, %v766
  %v768 = vpop.f32.mrf.mxu0
  %769 = vmatprep.mubr.f32.mxu0 0.0
  %770 = vmatmul.mubr.f32.gmra.mxu0 %v230
  %v771 = vpop.f32.mrf.mxu0
  %v772 = vadd.f32 0.0, %v771
  %v773 = vpop.f32.mrf.mxu0
  %774 = vmatprep.mubr.f32.mxu0 0.0
  %775 = vmatmul.mubr.f32.gmra.mxu0 %v233
  %v776 = vpop.f32.mrf.mxu0
  %v777 = vadd.f32 0.0, %v776
  %v778 = vpop.f32.mrf.mxu0
  %779 = vmatprep.mubr.f32.mxu0 0.0
  %780 = vmatmul.mubr.f32.gmra.mxu0 %v236
  %v781 = vpop.f32.mrf.mxu0
  %v782 = vadd.f32 0.0, %v781
  %v783 = vpop.f32.mrf.mxu0
  %784 = vmatprep.mubr.f32.mxu0 0.0
  %785 = vmatmul.mubr.f32.gmra.mxu0 %v239
  %v786 = vpop.f32.mrf.mxu0
  %v787 = vadd.f32 0.0, %v786
  %v788 = vpop.f32.mrf.mxu0
  %789 = vmatprep.mubr.f32.mxu0 0.0
  %790 = vmatmul.mubr.f32.gmra.mxu0 %v242
  %v791 = vpop.f32.mrf.mxu0
  %v792 = vadd.f32 0.0, %v791
  %v793 = vpop.f32.mrf.mxu0
  %794 = vmatprep.mubr.f32.mxu0 0.0
  %795 = vmatmul.mubr.f32.gmra.mxu0 %v245
  %v796 = vpop.f32.mrf.mxu0
  %v797 = vadd.f32 0.0, %v796
  %v798 = vpop.f32.mrf.mxu0
  %799 = vmatprep.mubr.f32.mxu0 0.0
  %800 = vmatmul.mubr.f32.gmra.mxu0 %v248
  %v801 = vpop.f32.mrf.mxu0
  %v802 = vadd.f32 0.0, %v801
  %v803 = vpop.f32.mrf.mxu0
  %804 = vmatprep.mubr.f32.mxu0 0.0
  %805 = vmatmul.mubr.f32.gmra.mxu0 %v251
  %v806 = vpop.f32.mrf.mxu0
  %v807 = vadd.f32 0.0, %v806
  %v808 = vpop.f32.mrf.mxu0
  %809 = vmatprep.mubr.f32.mxu0 0.0
  %810 = vmatmul.mubr.f32.gmra.mxu0 %v254
  %v811 = vpop.f32.mrf.mxu0
  %v812 = vadd.f32 0.0, %v811
  %v813 = vpop.f32.mrf.mxu0
  %814 = vmatprep.mubr.f32.mxu0 0.0
  %815 = vmatmul.mubr.f32.gmra.mxu0 %v257
  %v816 = vpop.f32.mrf.mxu0
  %v817 = vadd.f32 0.0, %v816
  %v818 = vpop.f32.mrf.mxu0
  %819 = vmatprep.mubr.f32.mxu0 0.0
  %820 = vmatmul.mubr.f32.gmra.mxu0 %v260
  %v821 = vpop.f32.mrf.mxu0
  %v822 = vadd.f32 0.0, %v821
  %v823 = vpop.f32.mrf.mxu0
  %824 = vmatprep.mubr.f32.mxu0 0.0
  %825 = vmatmul.mubr.f32.gmra.mxu0 %v263
  %v826 = vpop.f32.mrf.mxu0
  %v827 = vadd.f32 0.0, %v826
  %v828 = vpop.f32.mrf.mxu0
  %829 = vmatprep.mubr.f32.mxu0 0.0
  %830 = vmatmul.mubr.f32.gmra.mxu0 %v266
  %v831 = vpop.f32.mrf.mxu0
  %v832 = vadd.f32 0.0, %v831
  %v833 = vpop.f32.mrf.mxu0
  %834 = vmatprep.mubr.f32.mxu0 0.0
  %835 = vmatmul.mubr.f32.gmra.mxu0 %v269
  %v836 = vpop.f32.mrf.mxu0
  %v837 = vadd.f32 0.0, %v836
  %v838 = vpop.f32.mrf.mxu0
  %839 = vmatprep.mubr.f32.mxu0 0.0
  %840 = vmatmul.mubr.f32.gmra.mxu0 %v272
  %v841 = vpop.f32.mrf.mxu0
  %v842 = vadd.f32 0.0, %v841
  %v843 = vpop.f32.mrf.mxu0
  %844 = vmatprep.mubr.f32.mxu0 0.0
  %845 = vmatmul.mubr.f32.gmra.mxu0 %v275
  %v846 = vpop.f32.mrf.mxu0
  %v847 = vadd.f32 0.0, %v846
  %v848 = vpop.f32.mrf.mxu0
  %849 = vmatprep.mubr.f32.mxu0 0.0
  %850 = vmatmul.mubr.f32.gmra.mxu0 %v278
  %v851 = vpop.f32.mrf.mxu0
  %v852 = vadd.f32 0.0, %v851
  %v853 = vpop.f32.mrf.mxu0
  %854 = vmatprep.mubr.f32.mxu0 0.0
  %855 = vmatmul.mubr.f32.gmra.mxu0 %v281
  %v856 = vpop.f32.mrf.mxu0
  %v857 = vadd.f32 0.0, %v856
  %v858 = vpop.f32.mrf.mxu0
  %859 = vmatprep.mubr.f32.mxu0 0.0
  %860 = vmatmul.mubr.f32.gmra.mxu0 %v284
  %v861 = vpop.f32.mrf.mxu0
  %v862 = vadd.f32 0.0, %v861
  %v863 = vpop.f32.mrf.mxu0
  %864 = vmatprep.mubr.f32.mxu0 0.0
  %865 = vmatmul.mubr.f32.gmra.mxu0 %v287
  %v866 = vpop.f32.mrf.mxu0
  %v867 = vadd.f32 0.0, %v866
  %v868 = vpop.f32.mrf.mxu0
  %869 = vmatprep.mubr.f32.mxu0 0.0
  %870 = vmatmul.mubr.f32.gmra.mxu0 %v290
  %v871 = vpop.f32.mrf.mxu0
  %v872 = vadd.f32 0.0, %v871
  %v873 = vpop.f32.mrf.mxu0
  %874 = vmatprep.mubr.f32.mxu0 0.0
  %875 = vmatmul.mubr.f32.gmra.mxu0 %v293
  %v876 = vpop.f32.mrf.mxu0
  %v877 = vadd.f32 0.0, %v876
  %v878 = vpop.f32.mrf.mxu0
  %879 = vmatprep.mubr.f32.mxu0 0.0
  %880 = vmatmul.mubr.f32.gmra.mxu0 %v296
  %v881 = vpop.f32.mrf.mxu0
  %v882 = vadd.f32 0.0, %v881
  %v883 = vpop.f32.mrf.mxu0
  %884 = vmatprep.mubr.f32.mxu0 0.0
  %885 = vmatmul.mubr.f32.gmra.mxu0 %v299
  %v886 = vpop.f32.mrf.mxu0
  %v887 = vadd.f32 0.0, %v886
  %v888 = vpop.f32.mrf.mxu0
  %889 = vmatprep.mubr.f32.mxu0 0.0
  %890 = vmatmul.mubr.f32.gmra.mxu0 %v302
  %v891 = vpop.f32.mrf.mxu0
  %v892 = vadd.f32 0.0, %v891
  %v893 = vpop.f32.mrf.mxu0
  %894 = vmatprep.mubr.f32.mxu0 0.0
  %895 = vmatmul.mubr.f32.gmra.mxu0 %v305
  %v896 = vpop.f32.mrf.mxu0
  %v897 = vadd.f32 0.0, %v896
  %v898 = vpop.f32.mrf.mxu0
  %899 = vmatprep.mubr.f32.mxu0 0.0
  %900 = vmatmul.mubr.f32.gmra.mxu0 %v308
  %v901 = vpop.f32.mrf.mxu0
  %v902 = vadd.f32 0.0, %v901
  %v903 = vpop.f32.mrf.mxu0
  %904 = vmatprep.mubr.f32.mxu0 0.0
  %905 = vmatmul.mubr.f32.gmra.mxu0 %v311
  %v906 = vpop.f32.mrf.mxu0
  %v907 = vadd.f32 0.0, %v906
  %v908 = vpop.f32.mrf.mxu0
  %909 = vmatprep.mubr.f32.mxu0 0.0
  %910 = vmatmul.mubr.f32.gmra.mxu0 %v314
  %v911 = vpop.f32.mrf.mxu0
  %v912 = vadd.f32 0.0, %v911
  %v913 = vpop.f32.mrf.mxu0
  %914 = vmatprep.mubr.f32.mxu0 0.0
  %915 = vmatmul.mubr.f32.gmra.mxu0 %v317
  %v916 = vpop.f32.mrf.mxu0
  %v917 = vadd.f32 0.0, %v916
  %v918 = vpop.f32.mrf.mxu0
  %919 = vmatprep.mubr.f32.mxu0 0.0
  %920 = vmatmul.mubr.f32.gmra.mxu0 %v320
  %v921 = vpop.f32.mrf.mxu0
  %v922 = vadd.f32 0.0, %v921
  %v923 = vpop.f32.mrf.mxu0
  %924 = vmatprep.mubr.f32.mxu0 0.0
  %925 = vmatmul.mubr.f32.gmra.mxu0 %v323
  %v926 = vpop.f32.mrf.mxu0
  %v927 = vadd.f32 0.0, %v926
  %v928 = vpop.f32.mrf.mxu0
  %929 = vmatprep.mubr.f32.mxu0 0.0
  %930 = vmatmul.mubr.f32.gmra.mxu0 %v326
  %v931 = vpop.f32.mrf.mxu0
  %v932 = vadd.f32 0.0, %v931
  %v933 = vpop.f32.mrf.mxu0
  %934 = vmatprep.mubr.f32.mxu0 0.0
  %935 = vmatmul.mubr.f32.gmra.mxu0 %v329
  %v936 = vpop.f32.mrf.mxu0
  %v937 = vadd.f32 0.0, %v936
  %v938 = vpop.f32.mrf.mxu0
  %939 = vmatprep.mubr.f32.mxu0 0.0
  %940 = vmatmul.mubr.f32.gmra.mxu0 %v332
  %v941 = vpop.f32.mrf.mxu0
  %v942 = vadd.f32 0.0, %v941
  %v943 = vpop.f32.mrf.mxu0
  %944 = vmatprep.mubr.f32.mxu0 0.0
  %945 = vmatmul.mubr.f32.gmra.mxu0 %v335
  %v946 = vpop.f32.mrf.mxu0
  %v947 = vadd.f32 0.0, %v946
  %v948 = vpop.f32.mrf.mxu0
  %949 = vmatprep.mubr.f32.mxu0 0.0
  %950 = vmatmul.mubr.f32.gmra.mxu0 %v338
  %v951 = vpop.f32.mrf.mxu0
  %v952 = vadd.f32 0.0, %v951
  %v953 = vpop.f32.mrf.mxu0
  %954 = vmatprep.mubr.f32.mxu0 0.0
  %955 = vmatmul.mubr.f32.gmra.mxu0 %v341
  %v956 = vpop.f32.mrf.mxu0
  %v957 = vadd.f32 0.0, %v956
  %v958 = vpop.f32.mrf.mxu0
  %959 = vmatprep.mubr.f32.mxu0 0.0
  %960 = vmatmul.mubr.f32.gmra.mxu0 %v344
  %v961 = vpop.f32.mrf.mxu0
  %v962 = vadd.f32 0.0, %v961
  %v963 = vpop.f32.mrf.mxu0
  %964 = vmatprep.mubr.f32.mxu0 0.0
  %965 = vmatmul.mubr.f32.gmra.mxu0 %v347
  %v966 = vpop.f32.mrf.mxu0
  %v967 = vadd.f32 0.0, %v966
  %v968 = vpop.f32.mrf.mxu0
  %969 = vmatprep.mubr.f32.mxu0 0.0
  %970 = vmatmul.mubr.f32.gmra.mxu0 %v350
  %v971 = vpop.f32.mrf.mxu0
  %v972 = vadd.f32 0.0, %v971
  %v973 = vpop.f32.mrf.mxu0
  %974 = vmatprep.mubr.f32.mxu0 0.0
  %975 = vmatmul.mubr.f32.gmra.mxu0 %v353
  %v976 = vpop.f32.mrf.mxu0
  %v977 = vadd.f32 0.0, %v976
  %v978 = vpop.f32.mrf.mxu0
  %979 = vmatprep.mubr.f32.mxu0 0.0
  %980 = vmatmul.mubr.f32.gmra.mxu0 %v356
  %v981 = vpop.f32.mrf.mxu0
  %v982 = vadd.f32 0.0, %v981
  %v983 = vpop.f32.mrf.mxu0
  %984 = vmatprep.mubr.f32.mxu0 0.0
  %985 = vmatmul.mubr.f32.gmra.mxu0 %v359
  %v986 = vpop.f32.mrf.mxu0
  %v987 = vadd.f32 0.0, %v986
  %v988 = vpop.f32.mrf.mxu0
  %989 = vmatprep.mubr.f32.mxu0 0.0
  %990 = vmatmul.mubr.f32.gmra.mxu0 %v362
  %v991 = vpop.f32.mrf.mxu0
  %v992 = vadd.f32 0.0, %v991
  %v993 = vpop.f32.mrf.mxu0
  %994 = vmatprep.mubr.f32.mxu0 0.0
  %995 = vmatmul.mubr.f32.gmra.mxu0 %v365
  %v996 = vpop.f32.mrf.mxu0
  %v997 = vadd.f32 0.0, %v996
  %v998 = vpop.f32.mrf.mxu0
  %999 = vmatprep.mubr.f32.mxu0 0.0
  %1000 = vmatmul.mubr.f32.gmra.mxu0 %v368
  %v1001 = vpop.f32.mrf.mxu0
  %v1002 = vadd.f32 0.0, %v1001
  %v1003 = vpop.f32.mrf.mxu0
  %1004 = vmatprep.mubr.f32.mxu0 0.0
  %1005 = vmatmul.mubr.f32.gmra.mxu0 %v371
  %v1006 = vpop.f32.mrf.mxu0
  %v1007 = vadd.f32 0.0, %v1006
  %v1008 = vpop.f32.mrf.mxu0
  %1009 = vmatprep.mubr.f32.mxu0 0.0
  %1010 = vmatmul.mubr.f32.gmra.mxu0 %v374
  %v1011 = vpop.f32.mrf.mxu0
  %v1012 = vadd.f32 0.0, %v1011
  %v1013 = vpop.f32.mrf.mxu0
  %1014 = vmatprep.mubr.f32.mxu0 0.0
  %1015 = vmatmul.mubr.f32.gmra.mxu0 %v377
  %v1016 = vpop.f32.mrf.mxu0
  %v1017 = vadd.f32 0.0, %v1016
  %v1018 = vpop.f32.mrf.mxu0
  %1019 = vmatprep.mubr.f32.mxu0 0.0
  %1020 = vmatmul.mubr.f32.gmra.mxu0 %v380
  %v1021 = vpop.f32.mrf.mxu0
  %v1022 = vadd.f32 0.0, %v1021
  %v1023 = vpop.f32.mrf.mxu0
  %1024 = vmatprep.mubr.f32.mxu0 0.0
  %1025 = vmatmul.mubr.f32.gmra.mxu0 %v383
  %v1026 = vpop.f32.mrf.mxu0
  %v1027 = vadd.f32 0.0, %v1026
  %v1028 = vpop.f32.mrf.mxu0
  %1029 = vmatprep.mubr.f32.mxu0 0.0
  %1030 = vmatmul.mubr.f32.gmra.mxu0 %v386
  %v1031 = vpop.f32.mrf.mxu0
  %v1032 = vadd.f32 0.0, %v1031
  %v1033 = vpop.f32.mrf.mxu0
  %1034 = vmatprep.mubr.f32.mxu0 0.0
  %1035 = vmatmul.mubr.f32.gmra.mxu0 %v389
  %v1036 = vpop.f32.mrf.mxu0
  %v1037 = vadd.f32 0.0, %v1036
  %v1038 = vpop.f32.mrf.mxu0
  %1039 = vmatprep.mubr.f32.mxu0 0.0
  %1040 = vmatmul.mubr.f32.gmra.mxu0 %v392
  %v1041 = vpop.f32.mrf.mxu0
  %v1042 = vadd.f32 0.0, %v1041
  %v1043 = vpop.f32.mrf.mxu0
  %1044 = vmatprep.mubr.f32.mxu0 0.0
  %1045 = vmatmul.mubr.f32.gmra.mxu0 %v395
  %v1046 = vpop.f32.mrf.mxu0
  %v1047 = vadd.f32 0.0, %v1046
  %v1048 = vpop.f32.mrf.mxu0
  %1049 = vmatprep.mubr.f32.mxu0 0.0
  %1050 = vmatmul.mubr.f32.gmra.mxu0 %v398
  %v1051 = vpop.f32.mrf.mxu0
  %v1052 = vadd.f32 0.0, %v1051
  %v1053 = vpop.f32.mrf.mxu0
  %1054 = vmatprep.mubr.f32.mxu0 0.0
  %1055 = vmatmul.mubr.f32.gmra.mxu0 %v401
  %v1056 = vpop.f32.mrf.mxu0
  %v1057 = vadd.f32 0.0, %v1056
  %v1058 = vpop.f32.mrf.mxu0
  %1059 = vmatprep.mubr.f32.mxu0 0.0
  %1060 = vmatmul.mubr.f32.gmra.mxu0 %v404
  %v1061 = vpop.f32.mrf.mxu0
  %v1062 = vadd.f32 0.0, %v1061
  %v1063 = vpop.f32.mrf.mxu0
  %1064 = vmatprep.mubr.f32.mxu0 0.0
  %1065 = vmatmul.mubr.f32.gmra.mxu0 %v407
  %v1066 = vpop.f32.mrf.mxu0
  %v1067 = vadd.f32 0.0, %v1066
  %v1068 = vpop.f32.mrf.mxu0
  %1069 = vmatprep.mubr.f32.mxu0 0.0
  %1070 = vmatmul.mubr.f32.gmra.mxu0 %v410
  %v1071 = vpop.f32.mrf.mxu0
  %v1072 = vadd.f32 0.0, %v1071
  %v1073 = vpop.f32.mrf.mxu0
  %1074 = vmatprep.mubr.f32.mxu0 0.0
  %1075 = vmatmul.mubr.f32.gmra.mxu0 %v413
  %v1076 = vpop.f32.mrf.mxu0
  %v1077 = vadd.f32 0.0, %v1076
  %v1078 = vpop.f32.mrf.mxu0
  %1079 = vmatprep.mubr.f32.mxu0 0.0
  %1080 = vmatmul.mubr.f32.gmra.mxu0 %v416
  %v1081 = vpop.f32.mrf.mxu0
  %v1082 = vadd.f32 0.0, %v1081
  %v1083 = vpop.f32.mrf.mxu0
  %1084 = vmatprep.mubr.f32.mxu0 0.0
  %1085 = vmatmul.mubr.f32.gmra.mxu0 %v419
  %v1086 = vpop.f32.mrf.mxu0
  %v1087 = vadd.f32 0.0, %v1086
  %v1088 = vpop.f32.mrf.mxu0
  %1089 = vmatprep.mubr.f32.mxu0 0.0
  %1090 = vmatmul.mubr.f32.gmra.mxu0 %v422
  %v1091 = vpop.f32.mrf.mxu0
  %v1092 = vadd.f32 0.0, %v1091
  %v1093 = vpop.f32.mrf.mxu0
  %1094 = vmatprep.mubr.f32.mxu0 0.0
  %1095 = vmatmul.mubr.f32.gmra.mxu0 %v425
  %v1096 = vpop.f32.mrf.mxu0
  %v1097 = vadd.f32 0.0, %v1096
  %v1098 = vpop.f32.mrf.mxu0
  %1099 = vmatprep.mubr.f32.mxu0 0.0
  %1100 = vmatmul.mubr.f32.gmra.mxu0 %v428
  %v1101 = vpop.f32.mrf.mxu0
  %v1102 = vadd.f32 0.0, %v1101
  %v1103 = vpop.f32.mrf.mxu0
  %1104 = vmatprep.mubr.f32.mxu0 0.0
  %1105 = vmatmul.mubr.f32.gmra.mxu0 %v431
  %v1106 = vpop.f32.mrf.mxu0
  %v1107 = vadd.f32 0.0, %v1106
  %v1108 = vpop.f32.mrf.mxu0
  %1109 = vmatprep.mubr.f32.mxu0 0.0
  %1110 = vmatmul.mubr.f32.gmra.mxu0 %v434
  %v1111 = vpop.f32.mrf.mxu0
  %v1112 = vadd.f32 0.0, %v1111
  %v1113 = vpop.f32.mrf.mxu0
  %1114 = vmatprep.mubr.f32.mxu0 0.0
  %1115 = vmatmul.mubr.f32.gmra.mxu0 %v437
  %v1116 = vpop.f32.mrf.mxu0
  %v1117 = vadd.f32 0.0, %v1116
  %v1118 = vpop.f32.mrf.mxu0
  %1119 = vmatprep.mubr.f32.mxu0 0.0
  %1120 = vmatmul.mubr.f32.gmra.mxu0 %v440
  %v1121 = vpop.f32.mrf.mxu0
  %v1122 = vadd.f32 0.0, %v1121
  %v1123 = vpop.f32.mrf.mxu0
  %1124 = vmatprep.mubr.f32.mxu0 0.0
  %1125 = vmatmul.mubr.f32.gmra.mxu0 %v443
  %v1126 = vpop.f32.mrf.mxu0
  %v1127 = vadd.f32 0.0, %v1126
  %v1128 = vpop.f32.mrf.mxu0
  %1129 = vmatprep.mubr.f32.mxu0 0.0
  %1130 = vmatmul.mubr.f32.gmra.mxu0 %v446
  %v1131 = vpop.f32.mrf.mxu0
  %v1132 = vadd.f32 0.0, %v1131
  %v1133 = vpop.f32.mrf.mxu0
  %1134 = vmatprep.mubr.f32.mxu0 0.0
  %1135 = vmatmul.mubr.f32.gmra.mxu0 %v449
  %v1136 = vpop.f32.mrf.mxu0
  %v1137 = vadd.f32 0.0, %v1136
  %v1138 = vpop.f32.mrf.mxu0
  %1139 = vmatprep.mubr.f32.mxu0 0.0
  %1140 = vmatmul.mubr.f32.gmra.mxu0 %v452
  %v1141 = vpop.f32.mrf.mxu0
  %v1142 = vadd.f32 0.0, %v1141
  %v1143 = vpop.f32.mrf.mxu0
  %1144 = vmatprep.mubr.f32.mxu0 0.0
  %1145 = vmatmul.mubr.f32.gmra.mxu0 %v455
  %v1146 = vpop.f32.mrf.mxu0
  %v1147 = vadd.f32 0.0, %v1146
  %v1148 = vpop.f32.mrf.mxu0
  %1149 = vmatprep.mubr.f32.mxu0 0.0
  %1150 = vmatmul.mubr.f32.gmra.mxu0 %v458
  %v1151 = vpop.f32.mrf.mxu0
  %v1152 = vadd.f32 0.0, %v1151
  %v1153 = vpop.f32.mrf.mxu0
  %1154 = vmatprep.mubr.f32.mxu0 0.0
  %1155 = vmatmul.mubr.f32.gmra.mxu0 %v461
  %v1156 = vpop.f32.mrf.mxu0
  %v1157 = vadd.f32 0.0, %v1156
  %v1158 = vpop.f32.mrf.mxu0
  %1159 = vmatprep.mubr.f32.mxu0 0.0
  %1160 = vmatmul.mubr.f32.gmra.mxu0 %v464
  %v1161 = vpop.f32.mrf.mxu0
  %v1162 = vadd.f32 0.0, %v1161
  %v1163 = vpop.f32.mrf.mxu0
  %1164 = vmatprep.mubr.f32.mxu0 0.0
  %1165 = vmatmul.mubr.f32.gmra.mxu0 %v467
  %v1166 = vpop.f32.mrf.mxu0
  %v1167 = vadd.f32 0.0, %v1166
  %v1168 = vpop.f32.mrf.mxu0
  %1169 = vmatprep.mubr.f32.mxu0 0.0
  %1170 = vmatmul.mubr.f32.gmra.mxu0 %v470
  %v1171 = vpop.f32.mrf.mxu0
  %v1172 = vadd.f32 0.0, %v1171
  %v1173 = vpop.f32.mrf.mxu0
  %1174 = vmatprep.mubr.f32.mxu0 0.0
  %1175 = vmatmul.mubr.f32.gmra.mxu0 %v473
  %v1176 = vpop.f32.mrf.mxu0
  %v1177 = vadd.f32 0.0, %v1176
  %v1178 = vpop.f32.mrf.mxu0
  %1179 = vmatprep.mubr.f32.mxu0 0.0
  %1180 = vmatmul.mubr.f32.gmra.mxu0 %v476
  %v1181 = vpop.f32.mrf.mxu0
  %v1182 = vadd.f32 0.0, %v1181
  %v1183 = vpop.f32.mrf.mxu0
  %1184 = vmatprep.mubr.f32.mxu0 0.0
  %1185 = vmatmul.mubr.f32.gmra.mxu0 %v479
  %v1186 = vpop.f32.mrf.mxu0
  %v1187 = vadd.f32 0.0, %v1186
  %v1188 = vpop.f32.mrf.mxu0
  %1189 = vmatprep.mubr.f32.mxu0 0.0
  %1190 = vmatmul.mubr.f32.gmra.mxu0 %v482
  %v1191 = vpop.f32.mrf.mxu0
  %v1192 = vadd.f32 0.0, %v1191
  %v1193 = vpop.f32.mrf.mxu0
  %1194 = vmatprep.mubr.f32.mxu0 0.0
  %1195 = vmatmul.mubr.f32.gmra.mxu0 %v485
  %v1196 = vpop.f32.mrf.mxu0
  %v1197 = vadd.f32 0.0, %v1196
  %v1198 = vpop.f32.mrf.mxu0
  %1199 = vmatprep.mubr.f32.mxu0 0.0
  %1200 = vmatmul.mubr.f32.gmra.mxu0 %v488
  %v1201 = vpop.f32.mrf.mxu0
  %v1202 = vadd.f32 0.0, %v1201
  %v1203 = vpop.f32.mrf.mxu0
  %1204 = vmatprep.mubr.f32.mxu0 0.0
  %1205 = vmatmul.mubr.f32.gmra.mxu0 %v491
  %v1206 = vpop.f32.mrf.mxu0
  %v1207 = vadd.f32 0.0, %v1206
  %v1208 = vpop.f32.mrf.mxu0
  %1209 = vmatprep.mubr.f32.mxu0 0.0
  %1210 = vmatmul.mubr.f32.gmra.mxu0 %v494
  %v1211 = vpop.f32.mrf.mxu0
  %v1212 = vadd.f32 0.0, %v1211
  %v1213 = vpop.f32.mrf.mxu0
  %1214 = vmatprep.mubr.f32.mxu0 0.0
  %1215 = vmatmul.mubr.f32.gmra.mxu0 %v497
  %v1216 = vpop.f32.mrf.mxu0
  %v1217 = vadd.f32 0.0, %v1216
  %v1218 = vpop.f32.mrf.mxu0
  %1219 = vmatprep.mubr.f32.mxu0 0.0
  %1220 = vmatmul.mubr.f32.gmra.mxu0 %v500
  %v1221 = vpop.f32.mrf.mxu0
  %v1222 = vadd.f32 0.0, %v1221
  %v1223 = vpop.f32.mrf.mxu0
  %1224 = vmatprep.mubr.f32.mxu0 0.0
  %1225 = vmatmul.mubr.f32.gmra.mxu0 %v503
  %v1226 = vpop.f32.mrf.mxu0
  %v1227 = vadd.f32 0.0, %v1226
  %v1228 = vpop.f32.mrf.mxu0
  %1229 = vmatprep.mubr.f32.mxu0 0.0
  %1230 = vmatmul.mubr.f32.gmra.mxu0 %v506
  %v1231 = vpop.f32.mrf.mxu0
  %v1232 = vadd.f32 0.0, %v1231
  %v1233 = vpop.f32.mrf.mxu0
  %1234 = vmatprep.mubr.f32.mxu0 0.0
  %1235 = vmatmul.mubr.f32.gmra.mxu0 %v509
  %v1236 = vpop.f32.mrf.mxu0
  %v1237 = vadd.f32 0.0, %v1236
  %v1238 = vpop.f32.mrf.mxu0
  %1239 = vmatprep.mubr.f32.mxu0 0.0
  %1240 = vmatmul.mubr.f32.gmra.mxu0 %v512
  %v1241 = vpop.f32.mrf.mxu0
  %v1242 = vadd.f32 0.0, %v1241
  %v1243 = vpop.f32.mrf.mxu0
  %1244 = vmatprep.mubr.f32.mxu0 0.0
  %1245 = vmatmul.mubr.f32.gmra.mxu0 %v515
  %v1246 = vpop.f32.mrf.mxu0
  %v1247 = vadd.f32 0.0, %v1246
  %v1248 = vpop.f32.mrf.mxu0
  %1249 = vmatprep.mubr.f32.mxu0 0.0
  %1250 = vmatmul.mubr.f32.gmra.mxu0 %v518
  %v1251 = vpop.f32.mrf.mxu0
  %v1252 = vadd.f32 0.0, %v1251
  %v1253 = vpop.f32.mrf.mxu0
  %1254 = vmatprep.mubr.f32.mxu0 0.0
  %1255 = vmatmul.mubr.f32.gmra.mxu0 %v521
  %v1256 = vpop.f32.mrf.mxu0
  %v1257 = vadd.f32 0.0, %v1256
  %v1258 = vpop.f32.mrf.mxu0
  %1259 = vmatprep.mubr.f32.mxu0 0.0
  %1260 = vmatmul.mubr.f32.gmra.mxu0 %v524
  %v1261 = vpop.f32.mrf.mxu0
  %v1262 = vadd.f32 0.0, %v1261
  %v1263 = vpop.f32.mrf.mxu0
  %1264 = vmatprep.mubr.f32.mxu0 0.0
  %1265 = vmatmul.mubr.f32.gmra.mxu0 %v527
  %v1266 = vpop.f32.mrf.mxu0
  %v1267 = vadd.f32 0.0, %v1266
  %v1268 = vpop.f32.mrf.mxu0
  %1269 = vmatprep.mubr.f32.mxu0 0.0
  %1270 = vmatmul.mubr.f32.gmra.mxu0 %v530
  %v1271 = vpop.f32.mrf.mxu0
  %v1272 = vadd.f32 0.0, %v1271
  %v1273 = vpop.f32.mrf.mxu0
  %1274 = vmatprep.mubr.f32.mxu0 0.0
  %1275 = vmatmul.mubr.f32.gmra.mxu0 %v533
  %v1276 = vpop.f32.mrf.mxu0
  %v1277 = vadd.f32 0.0, %v1276
  %v1278 = vpop.f32.mrf.mxu0
  %1279 = vmatprep.mubr.f32.mxu0 0.0
  %1280 = vmatmul.mubr.f32.gmra.mxu0 %v536
  %v1281 = vpop.f32.mrf.mxu0
  %v1282 = vadd.f32 0.0, %v1281
  %v1283 = vpop.f32.mrf.mxu0
  %1284 = vmatprep.mubr.f32.mxu0 0.0
  %1285 = vmatmul.mubr.f32.gmra.mxu0 %v539
  %v1286 = vpop.f32.mrf.mxu0
  %v1287 = vadd.f32 0.0, %v1286
  %v1288 = vpop.f32.mrf.mxu0
  %1289 = vmatprep.mubr.f32.mxu0 0.0
  %1290 = vmatmul.mubr.f32.gmra.mxu0 %v542
  %v1291 = vpop.f32.mrf.mxu0
  %v1292 = vadd.f32 0.0, %v1291
  %v1293 = vpop.f32.mrf.mxu0
  %1294 = vmatprep.mubr.f32.mxu0 0.0
  %1295 = vmatmul.mubr.f32.gmra.mxu0 %v545
  %v1296 = vpop.f32.mrf.mxu0
  %v1297 = vadd.f32 0.0, %v1296
  %v1298 = vpop.f32.mrf.mxu0
  %1299 = vmatprep.mubr.f32.mxu0 0.0
  %1300 = vmatmul.mubr.f32.gmra.mxu0 %v548
  %v1301 = vpop.f32.mrf.mxu0
  %v1302 = vadd.f32 0.0, %v1301
  %v1303 = vpop.f32.mrf.mxu0
  %1304 = vmatprep.mubr.f32.mxu0 0.0
  %1305 = vmatmul.mubr.f32.gmra.mxu0 %v551
  %v1306 = vpop.f32.mrf.mxu0
  %v1307 = vadd.f32 0.0, %v1306
  %v1308 = vpop.f32.mrf.mxu0
  %1309 = vmatprep.mubr.f32.mxu0 0.0
  %1310 = vmatmul.mubr.f32.gmra.mxu0 %v554
  %v1311 = vpop.f32.mrf.mxu0
  %v1312 = vadd.f32 0.0, %v1311
  %v1313 = vpop.f32.mrf.mxu0
  %1314 = vmatprep.mubr.f32.mxu0 0.0
  %1315 = vmatmul.mubr.f32.gmra.mxu0 %v557
  %v1316 = vpop.f32.mrf.mxu0
  %v1317 = vadd.f32 0.0, %v1316
  %v1318 = vpop.f32.mrf.mxu0
  %1319 = vmatprep.mubr.f32.mxu0 0.0
  %1320 = vmatmul.mubr.f32.gmra.mxu0 %v560
  %v1321 = vpop.f32.mrf.mxu0
  %v1322 = vadd.f32 0.0, %v1321
  %v1323 = vpop.f32.mrf.mxu0
  %1324 = vmatprep.mubr.f32.mxu0 0.0
  %1325 = vmatmul.mubr.f32.gmra.mxu0 %v563
  %v1326 = vpop.f32.mrf.mxu0
  %v1327 = vadd.f32 0.0, %v1326
  %v1328 = vpop.f32.mrf.mxu0
  %1329 = vmatprep.mubr.f32.mxu0 0.0
  %1330 = vmatmul.mubr.f32.gmra.mxu0 %v566
  %v1331 = vpop.f32.mrf.mxu0
  %v1332 = vadd.f32 0.0, %v1331
  %v1333 = vpop.f32.mrf.mxu0
  %1334 = vmatprep.mubr.f32.mxu0 0.0
  %1335 = vmatmul.mubr.f32.gmra.mxu0 %v569
  %v1336 = vpop.f32.mrf.mxu0
  %v1337 = vadd.f32 0.0, %v1336
  %v1338 = vpop.f32.mrf.mxu0
  %1339 = vmatprep.mubr.f32.mxu0 0.0
  %1340 = vmatmul.mubr.f32.gmra.mxu0 %v572
  %v1341 = vpop.f32.mrf.mxu0
  %v1342 = vadd.f32 0.0, %v1341
  %v1343 = vpop.f32.mrf.mxu0
  %1344 = vmatprep.mubr.f32.mxu0 0.0
  %1345 = vmatmul.mubr.f32.gmra.mxu0 %v575
  %v1346 = vpop.f32.mrf.mxu0
  %v1347 = vadd.f32 0.0, %v1346
  %v1348 = vpop.f32.mrf.mxu0
  %1349 = vmatprep.mubr.f32.mxu0 0.0
  %1350 = vmatmul.mubr.f32.gmra.mxu0 %v578
  %v1351 = vpop.f32.mrf.mxu0
  %v1352 = vadd.f32 0.0, %v1351
  %v1353 = vpop.f32.mrf.mxu0
  %1354 = vmatprep.mubr.f32.mxu0 0.0
  %1355 = vmatmul.mubr.f32.gmra.mxu0 %v581
  %v1356 = vpop.f32.mrf.mxu0
  %v1357 = vadd.f32 0.0, %v1356
  %v1358 = vpop.f32.mrf.mxu0
  %1359 = vmatprep.mubr.f32.mxu0 0.0
  %1360 = vmatmul.mubr.f32.gmra.mxu0 %v584
  %v1361 = vpop.f32.mrf.mxu0
  %v1362 = vadd.f32 0.0, %v1361
  %v1363 = vpop.f32.mrf.mxu0
  %1364 = vmatprep.mubr.f32.mxu0 0.0
  %1365 = vmatmul.mubr.f32.gmra.mxu0 %v587
  %v1366 = vpop.f32.mrf.mxu0
  %v1367 = vadd.f32 0.0, %v1366
  %v1368 = vpop.f32.mrf.mxu0
  %1369 = vmatprep.mubr.f32.mxu0 0.0
  %1370 = vmatmul.mubr.f32.gmra.mxu0 %v590
  %v1371 = vpop.f32.mrf.mxu0
  %v1372 = vadd.f32 0.0, %v1371
  %v1373 = vpop.f32.mrf.mxu0
  %1374 = vmatprep.mubr.f32.mxu0 0.0
  %1375 = vmatmul.mubr.f32.gmra.mxu0 %v593
  %v1376 = vpop.f32.mrf.mxu0
  %v1377 = vadd.f32 0.0, %v1376
  %v1378 = vpop.f32.mrf.mxu0
  %1379 = vdwg.mxu0
  %v1380 = vmax.f32 %v662, %v752
  %v1381 = vmax.f32 %v667, %v757
  %v1382 = vmax.f32 %v672, %v762
  %v1383 = vmax.f32 %v677, %v767
  %v1384 = vmax.f32 %v682, %v772
  %v1385 = vmax.f32 %v687, %v777
  %v1386 = vmax.f32 %v692, %v782
  %v1387 = vmax.f32 %v697, %v787
  %v1388 = vmax.f32 %v702, %v792
  %v1389 = vmax.f32 %v707, %v797
  %v1390 = vmax.f32 %v712, %v802
  %v1391 = vmax.f32 %v717, %v807
  %v1392 = vmax.f32 %v722, %v812
  %v1393 = vmax.f32 %v727, %v817
  %v1394 = vmax.f32 %v732, %v822
  %v1395 = vmax.f32 %v737, %v827
  %v1396 = vmax.f32 %v742, %v832
  %v1397 = vmax.f32 %v747, %v837
  %v1398 = vmax.f32 %v1022, %v1112
  %v1399 = vmax.f32 %v1027, %v1117
  %v1400 = vmax.f32 %v1032, %v1122
  %v1401 = vmax.f32 %v1037, %v1127
  %v1402 = vmax.f32 %v1042, %v1132
  %v1403 = vmax.f32 %v1047, %v1137
  %v1404 = vmax.f32 %v1052, %v1142
  %v1405 = vmax.f32 %v1057, %v1147
  %v1406 = vmax.f32 %v1062, %v1152
  %v1407 = vmax.f32 %v1067, %v1157
  %v1408 = vmax.f32 %v1072, %v1162
  %v1409 = vmax.f32 %v1077, %v1167
  %v1410 = vmax.f32 %v1082, %v1172
  %v1411 = vmax.f32 %v1087, %v1177
  %v1412 = vmax.f32 %v1092, %v1182
  %v1413 = vmax.f32 %v1097, %v1187
  %v1414 = vmax.f32 %v1102, %v1192
  %v1415 = vmax.f32 %v1107, %v1197
  %v1416 = vmax.f32 %v842, %v932
  %v1417 = vmax.f32 %v847, %v937
  %v1418 = vmax.f32 %v852, %v942
  %v1419 = vmax.f32 %v857, %v947
  %v1420 = vmax.f32 %v862, %v952
  %v1421 = vmax.f32 %v867, %v957
  %v1422 = vmax.f32 %v872, %v962
  %v1423 = vmax.f32 %v877, %v967
  %v1424 = vmax.f32 %v882, %v972
  %v1425 = vmax.f32 %v887, %v977
  %v1426 = vmax.f32 %v892, %v982
  %v1427 = vmax.f32 %v897, %v987
  %v1428 = vmax.f32 %v902, %v992
  %v1429 = vmax.f32 %v907, %v997
  %v1430 = vmax.f32 %v912, %v1002
  %v1431 = vmax.f32 %v917, %v1007
  %v1432 = vmax.f32 %v922, %v1012
  %v1433 = vmax.f32 %v927, %v1017
  %v1434 = vmax.f32 %v1202, %v1292
  %v1435 = vmax.f32 %v1207, %v1297
  %v1436 = vmax.f32 %v1212, %v1302
  %v1437 = vmax.f32 %v1217, %v1307
  %v1438 = vmax.f32 %v1222, %v1312
  %v1439 = vmax.f32 %v1227, %v1317
  %v1440 = vmax.f32 %v1232, %v1322
  %v1441 = vmax.f32 %v1237, %v1327
  %v1442 = vmax.f32 %v1242, %v1332
  %v1443 = vmax.f32 %v1247, %v1337
  %v1444 = vmax.f32 %v1252, %v1342
  %v1445 = vmax.f32 %v1257, %v1347
  %v1446 = vmax.f32 %v1262, %v1352
  %v1447 = vmax.f32 %v1267, %v1357
  %v1448 = vmax.f32 %v1272, %v1362
  %v1449 = vmax.f32 %v1277, %v1367
  %v1450 = vmax.f32 %v1282, %v1372
  %v1451 = vmax.f32 %v1287, %v1377
  %v1452 = vmax.f32 %v1380, %v1416
  %v1453 = vmax.f32 %v1381, %v1417
  %v1454 = vmax.f32 %v1382, %v1418
  %v1455 = vmax.f32 %v1383, %v1419
  %v1456 = vmax.f32 %v1384, %v1420
  %v1457 = vmax.f32 %v1385, %v1421
  %v1458 = vmax.f32 %v1386, %v1422
  %v1459 = vmax.f32 %v1387, %v1423
  %v1460 = vmax.f32 %v1388, %v1424
  %v1461 = vmax.f32 %v1389, %v1425
  %v1462 = vmax.f32 %v1390, %v1426
  %v1463 = vmax.f32 %v1391, %v1427
  %v1464 = vmax.f32 %v1392, %v1428
  %v1465 = vmax.f32 %v1393, %v1429
  %v1466 = vmax.f32 %v1394, %v1430
  %v1467 = vmax.f32 %v1395, %v1431
  %v1468 = vmax.f32 %v1396, %v1432
  %v1469 = vmax.f32 %v1397, %v1433
  %v1470 = vmax.f32 %v1398, %v1434
  %v1471 = vmax.f32 %v1399, %v1435
  %v1472 = vmax.f32 %v1400, %v1436
  %v1473 = vmax.f32 %v1401, %v1437
  %v1474 = vmax.f32 %v1402, %v1438
  %v1475 = vmax.f32 %v1403, %v1439
  %v1476 = vmax.f32 %v1404, %v1440
  %v1477 = vmax.f32 %v1405, %v1441
  %v1478 = vmax.f32 %v1406, %v1442
  %v1479 = vmax.f32 %v1407, %v1443
  %v1480 = vmax.f32 %v1408, %v1444
  %v1481 = vmax.f32 %v1409, %v1445
  %v1482 = vmax.f32 %v1410, %v1446
  %v1483 = vmax.f32 %v1411, %v1447
  %v1484 = vmax.f32 %v1412, %v1448
  %v1485 = vmax.f32 %v1413, %v1449
  %v1486 = vmax.f32 %v1414, %v1450
  %v1487 = vmax.f32 %v1415, %v1451
  %v1488 = vld [vmem:[%s2] sm:$0x1]
  %v1490 = vlaneseq
  %v1491 = vshrl.u32 %v1490, 7
  %v1492 = vsub.s32 0, %v1491
  %v1493 = vrot.slane %v1488, %v1492
  %v1495 = vadd.f32 %v1452, %v1493
  %v1496 = vadd.f32 %v1453, %v1493
  %v1497 = vadd.f32 %v1454, %v1493
  %v1498 = vadd.f32 %v1455, %v1493
  %v1499 = vadd.f32 %v1456, %v1493
  %v1500 = vadd.f32 %v1457, %v1493
  %v1501 = vadd.f32 %v1458, %v1493
  %v1502 = vadd.f32 %v1459, %v1493
  %v1503 = vadd.f32 %v1460, %v1493
  %v1504 = vadd.f32 %v1461, %v1493
  %v1505 = vadd.f32 %v1462, %v1493
  %v1506 = vadd.f32 %v1463, %v1493
  %v1507 = vadd.f32 %v1464, %v1493
  %v1508 = vadd.f32 %v1465, %v1493
  %v1509 = vadd.f32 %v1466, %v1493
  %v1510 = vadd.f32 %v1467, %v1493
  %v1511 = vadd.f32 %v1468, %v1493
  %v1512 = vadd.f32 %v1469, %v1493
  %v1513 = vadd.f32 %v1470, %v1493
  %v1514 = vadd.f32 %v1471, %v1493
  %v1515 = vadd.f32 %v1472, %v1493
  %v1516 = vadd.f32 %v1473, %v1493
  %v1517 = vadd.f32 %v1474, %v1493
  %v1518 = vadd.f32 %v1475, %v1493
  %v1519 = vadd.f32 %v1476, %v1493
  %v1520 = vadd.f32 %v1477, %v1493
  %v1521 = vadd.f32 %v1478, %v1493
  %v1522 = vadd.f32 %v1479, %v1493
  %v1523 = vadd.f32 %v1480, %v1493
  %v1524 = vadd.f32 %v1481, %v1493
  %v1525 = vadd.f32 %v1482, %v1493
  %v1526 = vadd.f32 %v1483, %v1493
  %v1527 = vadd.f32 %v1484, %v1493
  %v1528 = vadd.f32 %v1485, %v1493
  %v1529 = vadd.f32 %v1486, %v1493
  %v1530 = vadd.f32 %v1487, %v1493
  %v1531 = vmax.f32 %v1495, 0.0
  %v1532 = vmax.f32 %v1496, 0.0
  %v1533 = vmax.f32 %v1497, 0.0
  %v1534 = vmax.f32 %v1498, 0.0
  %v1535 = vmax.f32 %v1499, 0.0
  %v1536 = vmax.f32 %v1500, 0.0
  %v1537 = vmax.f32 %v1501, 0.0
  %v1538 = vmax.f32 %v1502, 0.0
  %v1539 = vmax.f32 %v1503, 0.0
  %v1540 = vmax.f32 %v1504, 0.0
  %v1541 = vmax.f32 %v1505, 0.0
  %v1542 = vmax.f32 %v1506, 0.0
  %v1543 = vmax.f32 %v1507, 0.0
  %v1544 = vmax.f32 %v1508, 0.0
  %v1545 = vmax.f32 %v1509, 0.0
  %v1546 = vmax.f32 %v1510, 0.0
  %v1547 = vmax.f32 %v1511, 0.0
  %v1548 = vmax.f32 %v1512, 0.0
  %v1549 = vmax.f32 %v1513, 0.0
  %v1550 = vmax.f32 %v1514, 0.0
  %v1551 = vmax.f32 %v1515, 0.0
  %v1552 = vmax.f32 %v1516, 0.0
  %v1553 = vmax.f32 %v1517, 0.0
  %v1554 = vmax.f32 %v1518, 0.0
  %v1555 = vmax.f32 %v1519, 0.0
  %v1556 = vmax.f32 %v1520, 0.0
  %v1557 = vmax.f32 %v1521, 0.0
  %v1558 = vmax.f32 %v1522, 0.0
  %v1559 = vmax.f32 %v1523, 0.0
  %v1560 = vmax.f32 %v1524, 0.0
  %v1561 = vmax.f32 %v1525, 0.0
  %v1562 = vmax.f32 %v1526, 0.0
  %v1563 = vmax.f32 %v1527, 0.0
  %v1564 = vmax.f32 %v1528, 0.0
  %v1565 = vmax.f32 %v1529, 0.0
  %v1566 = vmax.f32 %v1530, 0.0
  %1567 = vst [vmem:[%s3] sm:$0xff] %v1531
  %1568 = vst [vmem:[%s3 + $0x8] sm:$0xff] %v1532
  %1569 = vst [vmem:[%s3 + $0x10] sm:$0xff] %v1533
  %1570 = vst [vmem:[%s3 + $0x18] sm:$0xff] %v1534
  %1571 = vst [vmem:[%s3 + $0x20] sm:$0xff] %v1535
  %1572 = vst [vmem:[%s3 + $0x28] sm:$0xff] %v1536
  %1573 = vst [vmem:[%s3 + $0x30] sm:$0xff] %v1537
  %1574 = vst [vmem:[%s3 + $0x38] sm:$0xff] %v1538
  %1575 = vst [vmem:[%s3 + $0x40] sm:$0xff] %v1539
  %1576 = vst [vmem:[%s3 + $0x48] sm:$0xff] %v1540
  %1577 = vst [vmem:[%s3 + $0x50] sm:$0xff] %v1541
  %1578 = vst [vmem:[%s3 + $0x58] sm:$0xff] %v1542
  %1579 = vst [vmem:[%s3 + $0x60] sm:$0xff] %v1543
  %1580 = vst [vmem:[%s3 + $0x68] sm:$0xff] %v1544
  %1581 = vst [vmem:[%s3 + $0x70] sm:$0xff] %v1545
  %1582 = vst [vmem:[%s3 + $0x78] sm:$0xff] %v1546
  %1583 = vst [vmem:[%s3 + $0x80] sm:$0xff] %v1547
  %1584 = vst [vmem:[%s3 + $0x88] sm:$0xff] %v1548
  %1585 = vst [vmem:[%s3 + $0x90] sm:$0xff] %v1549
  %1586 = vst [vmem:[%s3 + $0x98] sm:$0xff] %v1550
  %1587 = vst [vmem:[%s3 + $0xa0] sm:$0xff] %v1551
  %1588 = vst [vmem:[%s3 + $0xa8] sm:$0xff] %v1552
  %1589 = vst [vmem:[%s3 + $0xb0] sm:$0xff] %v1553
  %1590 = vst [vmem:[%s3 + $0xb8] sm:$0xff] %v1554
  %1591 = vst [vmem:[%s3 + $0xc0] sm:$0xff] %v1555
  %1592 = vst [vmem:[%s3 + $0xc8] sm:$0xff] %v1556
  %1593 = vst [vmem:[%s3 + $0xd0] sm:$0xff] %v1557
  %1594 = vst [vmem:[%s3 + $0xd8] sm:$0xff] %v1558
  %1595 = vst [vmem:[%s3 + $0xe0] sm:$0xff] %v1559
  %1596 = vst [vmem:[%s3 + $0xe8] sm:$0xff] %v1560
  %1597 = vst [vmem:[%s3 + $0xf0] sm:$0xff] %v1561
  %1598 = vst [vmem:[%s3 + $0xf8] sm:$0xff] %v1562
  %1599 = vst [vmem:[%s3 + $0x100] sm:$0xff] %v1563
  %1600 = vst [vmem:[%s3 + $0x108] sm:$0xff] %v1564
  %1601 = vst [vmem:[%s3 + $0x110] sm:$0xff] %v1565
  %1602 = vst [vmem:[%s3 + $0x118] sm:$0xff] %v1566
  // Predicated region
  $region14: #{net_forward.3} parent=0 // pred_check
    _
  $region15: #{net_forward.3} parent=0 // pred_check_branch
    %1604 = sbr.rel (0) target = $region17
  $region16: #{net_forward.3} parent=0 // pred_region
    _
  $region17: #{net_forward.3} parent=0 // pred_fallthru
    _
  // Predicated region
  $region18: #{net_forward.3} parent=0 // pred_check
    _
  $region19: #{net_forward.3} parent=0 // pred_check_branch
    %1606 = sbr.rel (0) target = $region21
  $region20: #{net_forward.3} parent=0 // pred_region
    _
  $region21: #{net_forward.3} parent=0 // pred_fallthru
    _

// kernel: net_forward.4
$region0: #{net_forward.4}
  #allocation0 [shape = 'u32[]', space=smem, size = 0x4, offset = 0x4, fixed_abs, tag = 'smem constant byte address 0x4 - core index']
  #allocation1 [shape = 'u32[144,128]{1,0:T(1,128)}', space=vmem, size = 0x12000, scoped, tag = 'internal scratch']
  %s0 = inlined_call_operand.vmem [shape: f32[2,4,16,256], index: 0, kind: input, shape index: {}]
  %s1 = inlined_call_operand.vmem [shape: f32[256,128], index: 1, kind: input, shape index: {}]
  %s2 = inlined_call_operand.vmem [shape: f32[1,1,128], index: 2, kind: input, shape index: {}]
  %s3 = inlined_call_operand.vmem [shape: f32[2,16,128], index: 3, kind: output, shape index: {}]
  %s4 = sld [smem:[#allocation0]]
  $region22: #{net_forward.4} parent=0
    _
  %s6 = ssub.s32 1, %s4
  %s7 = scalar_select 0, %s6, %s4
  // Predicated region
  $region2: #{net_forward.4} parent=0 // pred_check
    _
  $region3: #{net_forward.4} parent=0 // pred_check_branch
    %9 = sbr.rel (0) target = $region5
  $region4: #{net_forward.4} parent=0 // pred_region
    _
  $region5: #{net_forward.4} parent=0 // pred_fallthru
    _
  // Predicated region
  $region6: #{net_forward.4} parent=0 // pred_check
    _
  $region7: #{net_forward.4} parent=0 // pred_check_branch
    %11 = sbr.rel (0) target = $region9
  $region8: #{net_forward.4} parent=0 // pred_region
    _
  $region9: #{net_forward.4} parent=0 // pred_fallthru
    _
  // Predicated region
  $region10: #{net_forward.4} parent=0 // pred_check
    _
  $region11: #{net_forward.4} parent=0 // pred_check_branch
    %13 = sbr.rel (0) target = $region13
  $region12: #{net_forward.4} parent=0 // pred_region
    _
  $region13: #{net_forward.4} parent=0 // pred_fallthru
    _
  %v14 = vld [vmem:[%s0] sm:$0xff]
  %v15 = vld [vmem:[%s0 + $0x8] sm:$0xff]
  %v16 = vld [vmem:[%s0 + $0x10] sm:$0xff]
  %v17 = vld [vmem:[%s0 + $0x18] sm:$0xff]
  %v18 = vld [vmem:[%s0 + $0x20] sm:$0xff]
  %v19 = vld [vmem:[%s0 + $0x28] sm:$0xff]
  %v20 = vld [vmem:[%s0 + $0x30] sm:$0xff]
  %v21 = vld [vmem:[%s0 + $0x38] sm:$0xff]
  %v22 = vld [vmem:[%s0 + $0x40] sm:$0xff]
  %v23 = vld [vmem:[%s0 + $0x48] sm:$0xff]
  %v24 = vld [vmem:[%s0 + $0x50] sm:$0xff]
  %v25 = vld [vmem:[%s0 + $0x58] sm:$0xff]
  %v26 = vld [vmem:[%s0 + $0x60] sm:$0xff]
  %v27 = vld [vmem:[%s0 + $0x68] sm:$0xff]
  %v28 = vld [vmem:[%s0 + $0x70] sm:$0xff]
  %v29 = vld [vmem:[%s0 + $0x78] sm:$0xff]
  %v30 = vld [vmem:[%s0 + $0x80] sm:$0xff]
  %v31 = vld [vmem:[%s0 + $0x88] sm:$0xff]
  %v32 = vld [vmem:[%s0 + $0x90] sm:$0xff]
  %v33 = vld [vmem:[%s0 + $0x98] sm:$0xff]
  %v34 = vld [vmem:[%s0 + $0xa0] sm:$0xff]
  %v35 = vld [vmem:[%s0 + $0xa8] sm:$0xff]
  %v36 = vld [vmem:[%s0 + $0xb0] sm:$0xff]
  %v37 = vld [vmem:[%s0 + $0xb8] sm:$0xff]
  %v38 = vld [vmem:[%s0 + $0xc0] sm:$0xff]
  %v39 = vld [vmem:[%s0 + $0xc8] sm:$0xff]
  %v40 = vld [vmem:[%s0 + $0xd0] sm:$0xff]
  %v41 = vld [vmem:[%s0 + $0xd8] sm:$0xff]
  %v42 = vld [vmem:[%s0 + $0xe0] sm:$0xff]
  %v43 = vld [vmem:[%s0 + $0xe8] sm:$0xff]
  %v44 = vld [vmem:[%s0 + $0xf0] sm:$0xff]
  %v45 = vld [vmem:[%s0 + $0xf8] sm:$0xff]
  %v46 = vld [vmem:[%s1] sm:$0xff]
  %v47 = vld [vmem:[%s1 + $0x8] sm:$0xff]
  %v48 = vld [vmem:[%s1 + $0x10] sm:$0xff]
  %v49 = vld [vmem:[%s1 + $0x18] sm:$0xff]
  %v50 = vld [vmem:[%s1 + $0x20] sm:$0xff]
  %v51 = vld [vmem:[%s1 + $0x28] sm:$0xff]
  %v52 = vld [vmem:[%s1 + $0x30] sm:$0xff]
  %v53 = vld [vmem:[%s1 + $0x38] sm:$0xff]
  %v54 = vld [vmem:[%s1 + $0x40] sm:$0xff]
  %v55 = vld [vmem:[%s1 + $0x48] sm:$0xff]
  %v56 = vld [vmem:[%s1 + $0x50] sm:$0xff]
  %v57 = vld [vmem:[%s1 + $0x58] sm:$0xff]
  %v58 = vld [vmem:[%s1 + $0x60] sm:$0xff]
  %v59 = vld [vmem:[%s1 + $0x68] sm:$0xff]
  %v60 = vld [vmem:[%s1 + $0x70] sm:$0xff]
  %v61 = vld [vmem:[%s1 + $0x78] sm:$0xff]
  %v62 = vld [vmem:[%s1 + $0x80] sm:$0xff]
  %v63 = vld [vmem:[%s1 + $0x88] sm:$0xff]
  %v64 = vld [vmem:[%s1 + $0x90] sm:$0xff]
  %v65 = vld [vmem:[%s1 + $0x98] sm:$0xff]
  %v66 = vld [vmem:[%s1 + $0xa0] sm:$0xff]
  %v67 = vld [vmem:[%s1 + $0xa8] sm:$0xff]
  %v68 = vld [vmem:[%s1 + $0xb0] sm:$0xff]
  %v69 = vld [vmem:[%s1 + $0xb8] sm:$0xff]
  %v70 = vld [vmem:[%s1 + $0xc0] sm:$0xff]
  %v71 = vld [vmem:[%s1 + $0xc8] sm:$0xff]
  %v72 = vld [vmem:[%s1 + $0xd0] sm:$0xff]
  %v73 = vld [vmem:[%s1 + $0xd8] sm:$0xff]
  %v74 = vld [vmem:[%s1 + $0xe0] sm:$0xff]
  %v75 = vld [vmem:[%s1 + $0xe8] sm:$0xff]
  %v76 = vld [vmem:[%s1 + $0xf0] sm:$0xff]
  %v77 = vld [vmem:[%s1 + $0xf8] sm:$0xff]
  %78 = vmatprep.subr.mxu0 0.0
  %79 = vmatpush1.msra.mxu0 %v61
  %80 = vmatprep.subr.mxu0 0.0
  %81 = vmatpush1.msra.mxu0 %v60
  %82 = vmatprep.subr.mxu0 0.0
  %83 = vmatpush1.msra.mxu0 %v59
  %84 = vmatprep.subr.mxu0 0.0
  %85 = vmatpush1.msra.mxu0 %v58
  %86 = vmatprep.subr.mxu0 0.0
  %87 = vmatpush1.msra.mxu0 %v57
  %88 = vmatprep.subr.mxu0 0.0
  %89 = vmatpush1.msra.mxu0 %v56
  %90 = vmatprep.subr.mxu0 0.0
  %91 = vmatpush1.msra.mxu0 %v55
  %92 = vmatprep.subr.mxu0 0.0
  %93 = vmatpush1.msra.mxu0 %v54
  %94 = vmatprep.subr.mxu0 0.0
  %95 = vmatpush1.msra.mxu0 %v53
  %96 = vmatprep.subr.mxu0 0.0
  %97 = vmatpush1.msra.mxu0 %v52
  %98 = vmatprep.subr.mxu0 0.0
  %99 = vmatpush1.msra.mxu0 %v51
  %100 = vmatprep.subr.mxu0 0.0
  %101 = vmatpush1.msra.mxu0 %v50
  %102 = vmatprep.subr.mxu0 0.0
  %103 = vmatpush1.msra.mxu0 %v49
  %104 = vmatprep.subr.mxu0 0.0
  %105 = vmatpush1.msra.mxu0 %v48
  %106 = vmatprep.subr.mxu0 0.0
  %107 = vmatpush1.msra.mxu0 %v47
  %108 = vmatprep.subr.mxu0 0.0
  %109 = vmatpush1.msra.mxu0 %v46
  %110 = vmatprep.subr.mxu0 0.0
  %111 = vmatpush2.msra.mxu0 %v77
  %112 = vmatprep.subr.mxu0 0.0
  %113 = vmatpush2.msra.mxu0 %v76
  %114 = vmatprep.subr.mxu0 0.0
  %115 = vmatpush2.msra.mxu0 %v75
  %116 = vmatprep.subr.mxu0 0.0
  %117 = vmatpush2.msra.mxu0 %v74
  %118 = vmatprep.subr.mxu0 0.0
  %119 = vmatpush2.msra.mxu0 %v73
  %120 = vmatprep.subr.mxu0 0.0
  %121 = vmatpush2.msra.mxu0 %v72
  %122 = vmatprep.subr.mxu0 0.0
  %123 = vmatpush2.msra.mxu0 %v71
  %124 = vmatprep.subr.mxu0 0.0
  %125 = vmatpush2.msra.mxu0 %v70
  %126 = vmatprep.subr.mxu0 0.0
  %127 = vmatpush2.msra.mxu0 %v69
  %128 = vmatprep.subr.mxu0 0.0
  %129 = vmatpush2.msra.mxu0 %v68
  %130 = vmatprep.subr.mxu0 0.0
  %131 = vmatpush2.msra.mxu0 %v67
  %132 = vmatprep.subr.mxu0 0.0
  %133 = vmatpush2.msra.mxu0 %v66
  %134 = vmatprep.subr.mxu0 0.0
  %135 = vmatpush2.msra.mxu0 %v65
  %136 = vmatprep.subr.mxu0 0.0
  %137 = vmatpush2.msra.mxu0 %v64
  %138 = vmatprep.subr.mxu0 0.0
  %139 = vmatpush2.msra.mxu0 %v63
  %140 = vmatprep.subr.mxu0 0.0
  %141 = vmatpush2.msra.mxu0 %v62
  %142 = vmatprep.mubr.f32.mxu0 %v15
  %143 = vmatmul.mubr.f32.gmra.mxu0 %v14
  %v144 = vpop.f32.mrf.mxu0
  %v145 = vadd.f32 0.0, %v144
  %v146 = vpop.f32.mrf.mxu0
  %147 = vmatprep.mubr.f32.mxu0 %v17
  %148 = vmatmul.mubr.f32.gmra.mxu0 %v16
  %v149 = vpop.f32.mrf.mxu0
  %v150 = vadd.f32 0.0, %v149
  %v151 = vpop.f32.mrf.mxu0
  %152 = vmatprep.mubr.f32.mxu0 %v19
  %153 = vmatmul.mubr.f32.gmra.mxu0 %v18
  %v154 = vpop.f32.mrf.mxu0
  %v155 = vadd.f32 0.0, %v154
  %v156 = vpop.f32.mrf.mxu0
  %157 = vmatprep.mubr.f32.mxu0 %v21
  %158 = vmatmul.mubr.f32.gmra.mxu0 %v20
  %v159 = vpop.f32.mrf.mxu0
  %v160 = vadd.f32 0.0, %v159
  %v161 = vpop.f32.mrf.mxu0
  %162 = vmatprep.mubr.f32.mxu0 %v23
  %163 = vmatmul.mubr.f32.gmra.mxu0 %v22
  %v164 = vpop.f32.mrf.mxu0
  %v165 = vadd.f32 0.0, %v164
  %v166 = vpop.f32.mrf.mxu0
  %167 = vmatprep.mubr.f32.mxu0 %v25
  %168 = vmatmul.mubr.f32.gmra.mxu0 %v24
  %v169 = vpop.f32.mrf.mxu0
  %v170 = vadd.f32 0.0, %v169
  %v171 = vpop.f32.mrf.mxu0
  %172 = vmatprep.mubr.f32.mxu0 %v27
  %173 = vmatmul.mubr.f32.gmra.mxu0 %v26
  %v174 = vpop.f32.mrf.mxu0
  %v175 = vadd.f32 0.0, %v174
  %v176 = vpop.f32.mrf.mxu0
  %177 = vmatprep.mubr.f32.mxu0 %v29
  %178 = vmatmul.mubr.f32.gmra.mxu0 %v28
  %v179 = vpop.f32.mrf.mxu0
  %v180 = vadd.f32 0.0, %v179
  %v181 = vpop.f32.mrf.mxu0
  %182 = vmatprep.mubr.f32.mxu0 %v31
  %183 = vmatmul.mubr.f32.gmra.mxu0 %v30
  %v184 = vpop.f32.mrf.mxu0
  %v185 = vadd.f32 0.0, %v184
  %v186 = vpop.f32.mrf.mxu0
  %187 = vmatprep.mubr.f32.mxu0 %v33
  %188 = vmatmul.mubr.f32.gmra.mxu0 %v32
  %v189 = vpop.f32.mrf.mxu0
  %v190 = vadd.f32 0.0, %v189
  %v191 = vpop.f32.mrf.mxu0
  %192 = vmatprep.mubr.f32.mxu0 %v35
  %193 = vmatmul.mubr.f32.gmra.mxu0 %v34
  %v194 = vpop.f32.mrf.mxu0
  %v195 = vadd.f32 0.0, %v194
  %v196 = vpop.f32.mrf.mxu0
  %197 = vmatprep.mubr.f32.mxu0 %v37
  %198 = vmatmul.mubr.f32.gmra.mxu0 %v36
  %v199 = vpop.f32.mrf.mxu0
  %v200 = vadd.f32 0.0, %v199
  %v201 = vpop.f32.mrf.mxu0
  %202 = vmatprep.mubr.f32.mxu0 %v39
  %203 = vmatmul.mubr.f32.gmra.mxu0 %v38
  %v204 = vpop.f32.mrf.mxu0
  %v205 = vadd.f32 0.0, %v204
  %v206 = vpop.f32.mrf.mxu0
  %207 = vmatprep.mubr.f32.mxu0 %v41
  %208 = vmatmul.mubr.f32.gmra.mxu0 %v40
  %v209 = vpop.f32.mrf.mxu0
  %v210 = vadd.f32 0.0, %v209
  %v211 = vpop.f32.mrf.mxu0
  %212 = vmatprep.mubr.f32.mxu0 %v43
  %213 = vmatmul.mubr.f32.gmra.mxu0 %v42
  %v214 = vpop.f32.mrf.mxu0
  %v215 = vadd.f32 0.0, %v214
  %v216 = vpop.f32.mrf.mxu0
  %217 = vmatprep.mubr.f32.mxu0 %v45
  %218 = vmatmul.mubr.f32.gmra.mxu0 %v44
  %v219 = vpop.f32.mrf.mxu0
  %v220 = vadd.f32 0.0, %v219
  %v221 = vpop.f32.mrf.mxu0
  %222 = vdwg.mxu0
  %v223 = vmax.f32 %v145, %v155
  %v224 = vmax.f32 %v150, %v160
  %v225 = vmax.f32 %v185, %v195
  %v226 = vmax.f32 %v190, %v200
  %v227 = vmax.f32 %v165, %v175
  %v228 = vmax.f32 %v170, %v180
  %v229 = vmax.f32 %v205, %v215
  %v230 = vmax.f32 %v210, %v220
  %v231 = vmax.f32 %v223, %v227
  %v232 = vmax.f32 %v224, %v228
  %v233 = vmax.f32 %v225, %v229
  %v234 = vmax.f32 %v226, %v230
  %v235 = vld [vmem:[%s2] sm:$0x1]
  %v237 = vlaneseq
  %v238 = vshrl.u32 %v237, 7
  %v239 = vsub.s32 0, %v238
  %v240 = vrot.slane %v235, %v239
  %v242 = vadd.f32 %v231, %v240
  %v243 = vadd.f32 %v232, %v240
  %v244 = vadd.f32 %v233, %v240
  %v245 = vadd.f32 %v234, %v240
  %v246 = vmax.f32 %v242, 0.0
  %v247 = vmax.f32 %v243, 0.0
  %v248 = vmax.f32 %v244, 0.0
  %v249 = vmax.f32 %v245, 0.0
  %250 = vst [vmem:[%s3] sm:$0xff] %v246
  %251 = vst [vmem:[%s3 + $0x8] sm:$0xff] %v247
  %252 = vst [vmem:[%s3 + $0x10] sm:$0xff] %v248
  %253 = vst [vmem:[%s3 + $0x18] sm:$0xff] %v249
  // Predicated region
  $region14: #{net_forward.4} parent=0 // pred_check
    _
  $region15: #{net_forward.4} parent=0 // pred_check_branch
    %255 = sbr.rel (0) target = $region17
  $region16: #{net_forward.4} parent=0 // pred_region
    _
  $region17: #{net_forward.4} parent=0 // pred_fallthru
    _
  // Predicated region
  $region18: #{net_forward.4} parent=0 // pred_check
    _
  $region19: #{net_forward.4} parent=0 // pred_check_branch
    %257 = sbr.rel (0) target = $region21
  $region20: #{net_forward.4} parent=0 // pred_region
    _
  $region21: #{net_forward.4} parent=0 // pred_fallthru
    _

// kernel: net_forward.5
$region0: #{net_forward.5}
  #allocation0 [shape = 'u32[]', space=smem, size = 0x4, offset = 0x4, fixed_abs, tag = 'smem constant byte address 0x4 - core index']
  #allocation1 [shape = 'u32[144,128]{1,0:T(1,128)}', space=vmem, size = 0x12000, scoped, tag = 'internal scratch']
  %s0 = inlined_call_operand.vmem [shape: f32[2,2048], index: 0, kind: input, shape index: {}]
  %s1 = inlined_call_operand.vmem [shape: f32[2048,128], index: 1, kind: input, shape index: {}]
  %s2 = inlined_call_operand.vmem [shape: f32[1,128], index: 2, kind: input, shape index: {}]
  %s3 = inlined_call_operand.hbm [shape: f32[2,128], index: 3, kind: output, shape index: {}]
  %s4 = sld [smem:[#allocation0]]
  $region22: #{net_forward.5} parent=0
    _
  %s6 = ssub.s32 1, %s4
  %s7 = scalar_select 0, %s6, %s4
  $region1: #{net_forward.5} parent=0
    #allocation2 [shape = 'u8[1024]{0}', space=vmem, size = 0x400, scoped, tag = 'output window, operand 0, single buffered']
    #allocation3 [shape = 's32[1]{0}', space=sflag, size = 0x4, scoped, tag = 'scoped memory for net_forward.5']
    %8 = vsyncpa [#allocation3], 0
    // Predicated region
    $region2: #{net_forward.5} parent=1 // pred_check
      _
    $region3: #{net_forward.5} parent=1 // pred_check_branch
      %10 = sbr.rel (0) target = $region5
    $region4: #{net_forward.5} parent=1 // pred_region
      _
    $region5: #{net_forward.5} parent=1 // pred_fallthru
      _
    // Predicated region
    $region6: #{net_forward.5} parent=1 // pred_check
      _
    $region7: #{net_forward.5} parent=1 // pred_check_branch
      %12 = sbr.rel (0) target = $region9
    $region8: #{net_forward.5} parent=1 // pred_region
      _
    $region9: #{net_forward.5} parent=1 // pred_fallthru
      _
    // Predicated region
    $region10: #{net_forward.5} parent=1 // pred_check
      _
    $region11: #{net_forward.5} parent=1 // pred_check_branch
      %14 = sbr.rel (0) target = $region13
    $region12: #{net_forward.5} parent=1 // pred_region
      _
    $region13: #{net_forward.5} parent=1 // pred_fallthru
      _
    %v15 = vld [vmem:[%s0] sm:$0xff]
    %v16 = vld [vmem:[%s0 + $0x8] sm:$0xff]
    %v17 = vld [vmem:[%s0 + $0x10] sm:$0xff]
    %v18 = vld [vmem:[%s0 + $0x18] sm:$0xff]
    %v19 = vld [vmem:[%s1] sm:$0xff]
    %v20 = vld [vmem:[%s1 + $0x8] sm:$0xff]
    %v21 = vld [vmem:[%s1 + $0x10] sm:$0xff]
    %v22 = vld [vmem:[%s1 + $0x18] sm:$0xff]
    %v23 = vld [vmem:[%s1 + $0x20] sm:$0xff]
    %v24 = vld [vmem:[%s1 + $0x28] sm:$0xff]
    %v25 = vld [vmem:[%s1 + $0x30] sm:$0xff]
    %v26 = vld [vmem:[%s1 + $0x38] sm:$0xff]
    %v27 = vld [vmem:[%s1 + $0x40] sm:$0xff]
    %v28 = vld [vmem:[%s1 + $0x48] sm:$0xff]
    %v29 = vld [vmem:[%s1 + $0x50] sm:$0xff]
    %v30 = vld [vmem:[%s1 + $0x58] sm:$0xff]
    %v31 = vld [vmem:[%s1 + $0x60] sm:$0xff]
    %v32 = vld [vmem:[%s1 + $0x68] sm:$0xff]
    %v33 = vld [vmem:[%s1 + $0x70] sm:$0xff]
    %v34 = vld [vmem:[%s1 + $0x78] sm:$0xff]
    %v35 = vld [vmem:[%s1 + $0x80] sm:$0xff]
    %v36 = vld [vmem:[%s1 + $0x88] sm:$0xff]
    %v37 = vld [vmem:[%s1 + $0x90] sm:$0xff]
    %v38 = vld [vmem:[%s1 + $0x98] sm:$0xff]
    %v39 = vld [vmem:[%s1 + $0xa0] sm:$0xff]
    %v40 = vld [vmem:[%s1 + $0xa8] sm:$0xff]
    %v41 = vld [vmem:[%s1 + $0xb0] sm:$0xff]
    %v42 = vld [vmem:[%s1 + $0xb8] sm:$0xff]
    %v43 = vld [vmem:[%s1 + $0xc0] sm:$0xff]
    %v44 = vld [vmem:[%s1 + $0xc8] sm:$0xff]
    %v45 = vld [vmem:[%s1 + $0xd0] sm:$0xff]
    %v46 = vld [vmem:[%s1 + $0xd8] sm:$0xff]
    %v47 = vld [vmem:[%s1 + $0xe0] sm:$0xff]
    %v48 = vld [vmem:[%s1 + $0xe8] sm:$0xff]
    %v49 = vld [vmem:[%s1 + $0xf0] sm:$0xff]
    %v50 = vld [vmem:[%s1 + $0xf8] sm:$0xff]
    %v51 = vld [vmem:[%s1 + $0x100] sm:$0xff]
    %v52 = vld [vmem:[%s1 + $0x108] sm:$0xff]
    %v53 = vld [vmem:[%s1 + $0x110] sm:$0xff]
    %v54 = vld [vmem:[%s1 + $0x118] sm:$0xff]
    %v55 = vld [vmem:[%s1 + $0x120] sm:$0xff]
    %v56 = vld [vmem:[%s1 + $0x128] sm:$0xff]
    %v57 = vld [vmem:[%s1 + $0x130] sm:$0xff]
    %v58 = vld [vmem:[%s1 + $0x138] sm:$0xff]
    %v59 = vld [vmem:[%s1 + $0x140] sm:$0xff]
    %v60 = vld [vmem:[%s1 + $0x148] sm:$0xff]
    %v61 = vld [vmem:[%s1 + $0x150] sm:$0xff]
    %v62 = vld [vmem:[%s1 + $0x158] sm:$0xff]
    %v63 = vld [vmem:[%s1 + $0x160] sm:$0xff]
    %v64 = vld [vmem:[%s1 + $0x168] sm:$0xff]
    %v65 = vld [vmem:[%s1 + $0x170] sm:$0xff]
    %v66 = vld [vmem:[%s1 + $0x178] sm:$0xff]
    %v67 = vld [vmem:[%s1 + $0x180] sm:$0xff]
    %v68 = vld [vmem:[%s1 + $0x188] sm:$0xff]
    %v69 = vld [vmem:[%s1 + $0x190] sm:$0xff]
    %v70 = vld [vmem:[%s1 + $0x198] sm:$0xff]
    %v71 = vld [vmem:[%s1 + $0x1a0] sm:$0xff]
    %v72 = vld [vmem:[%s1 + $0x1a8] sm:$0xff]
    %v73 = vld [vmem:[%s1 + $0x1b0] sm:$0xff]
    %v74 = vld [vmem:[%s1 + $0x1b8] sm:$0xff]
    %v75 = vld [vmem:[%s1 + $0x1c0] sm:$0xff]
    %v76 = vld [vmem:[%s1 + $0x1c8] sm:$0xff]
    %v77 = vld [vmem:[%s1 + $0x1d0] sm:$0xff]
    %v78 = vld [vmem:[%s1 + $0x1d8] sm:$0xff]
    %v79 = vld [vmem:[%s1 + $0x1e0] sm:$0xff]
    %v80 = vld [vmem:[%s1 + $0x1e8] sm:$0xff]
    %v81 = vld [vmem:[%s1 + $0x1f0] sm:$0xff]
    %v82 = vld [vmem:[%s1 + $0x1f8] sm:$0xff]
    %v83 = vld [vmem:[%s1 + $0x200] sm:$0xff]
    %v84 = vld [vmem:[%s1 + $0x208] sm:$0xff]
    %v85 = vld [vmem:[%s1 + $0x210] sm:$0xff]
    %v86 = vld [vmem:[%s1 + $0x218] sm:$0xff]
    %v87 = vld [vmem:[%s1 + $0x220] sm:$0xff]
    %v88 = vld [vmem:[%s1 + $0x228] sm:$0xff]
    %v89 = vld [vmem:[%s1 + $0x230] sm:$0xff]
    %v90 = vld [vmem:[%s1 + $0x238] sm:$0xff]
    %v91 = vld [vmem:[%s1 + $0x240] sm:$0xff]
    %v92 = vld [vmem:[%s1 + $0x248] sm:$0xff]
    %v93 = vld [vmem:[%s1 + $0x250] sm:$0xff]
    %v94 = vld [vmem:[%s1 + $0x258] sm:$0xff]
    %v95 = vld [vmem:[%s1 + $0x260] sm:$0xff]
    %v96 = vld [vmem:[%s1 + $0x268] sm:$0xff]
    %v97 = vld [vmem:[%s1 + $0x270] sm:$0xff]
    %v98 = vld [vmem:[%s1 + $0x278] sm:$0xff]
    %v99 = vld [vmem:[%s1 + $0x280] sm:$0xff]
    %v100 = vld [vmem:[%s1 + $0x288] sm:$0xff]
    %v101 = vld [vmem:[%s1 + $0x290] sm:$0xff]
    %v102 = vld [vmem:[%s1 + $0x298] sm:$0xff]
    %v103 = vld [vmem:[%s1 + $0x2a0] sm:$0xff]
    %v104 = vld [vmem:[%s1 + $0x2a8] sm:$0xff]
    %v105 = vld [vmem:[%s1 + $0x2b0] sm:$0xff]
    %v106 = vld [vmem:[%s1 + $0x2b8] sm:$0xff]
    %v107 = vld [vmem:[%s1 + $0x2c0] sm:$0xff]
    %v108 = vld [vmem:[%s1 + $0x2c8] sm:$0xff]
    %v109 = vld [vmem:[%s1 + $0x2d0] sm:$0xff]
    %v110 = vld [vmem:[%s1 + $0x2d8] sm:$0xff]
    %v111 = vld [vmem:[%s1 + $0x2e0] sm:$0xff]
    %v112 = vld [vmem:[%s1 + $0x2e8] sm:$0xff]
    %v113 = vld [vmem:[%s1 + $0x2f0] sm:$0xff]
    %v114 = vld [vmem:[%s1 + $0x2f8] sm:$0xff]
    %v115 = vld [vmem:[%s1 + $0x300] sm:$0xff]
    %v116 = vld [vmem:[%s1 + $0x308] sm:$0xff]
    %v117 = vld [vmem:[%s1 + $0x310] sm:$0xff]
    %v118 = vld [vmem:[%s1 + $0x318] sm:$0xff]
    %v119 = vld [vmem:[%s1 + $0x320] sm:$0xff]
    %v120 = vld [vmem:[%s1 + $0x328] sm:$0xff]
    %v121 = vld [vmem:[%s1 + $0x330] sm:$0xff]
    %v122 = vld [vmem:[%s1 + $0x338] sm:$0xff]
    %v123 = vld [vmem:[%s1 + $0x340] sm:$0xff]
    %v124 = vld [vmem:[%s1 + $0x348] sm:$0xff]
    %v125 = vld [vmem:[%s1 + $0x350] sm:$0xff]
    %v126 = vld [vmem:[%s1 + $0x358] sm:$0xff]
    %v127 = vld [vmem:[%s1 + $0x360] sm:$0xff]
    %v128 = vld [vmem:[%s1 + $0x368] sm:$0xff]
    %v129 = vld [vmem:[%s1 + $0x370] sm:$0xff]
    %v130 = vld [vmem:[%s1 + $0x378] sm:$0xff]
    %v131 = vld [vmem:[%s1 + $0x380] sm:$0xff]
    %v132 = vld [vmem:[%s1 + $0x388] sm:$0xff]
    %v133 = vld [vmem:[%s1 + $0x390] sm:$0xff]
    %v134 = vld [vmem:[%s1 + $0x398] sm:$0xff]
    %v135 = vld [vmem:[%s1 + $0x3a0] sm:$0xff]
    %v136 = vld [vmem:[%s1 + $0x3a8] sm:$0xff]
    %v137 = vld [vmem:[%s1 + $0x3b0] sm:$0xff]
    %v138 = vld [vmem:[%s1 + $0x3b8] sm:$0xff]
    %v139 = vld [vmem:[%s1 + $0x3c0] sm:$0xff]
    %v140 = vld [vmem:[%s1 + $0x3c8] sm:$0xff]
    %v141 = vld [vmem:[%s1 + $0x3d0] sm:$0xff]
    %v142 = vld [vmem:[%s1 + $0x3d8] sm:$0xff]
    %v143 = vld [vmem:[%s1 + $0x3e0] sm:$0xff]
    %v144 = vld [vmem:[%s1 + $0x3e8] sm:$0xff]
    %v145 = vld [vmem:[%s1 + $0x3f0] sm:$0xff]
    %v146 = vld [vmem:[%s1 + $0x3f8] sm:$0xff]
    %v147 = vld [vmem:[%s1 + $0x400] sm:$0xff]
    %v148 = vld [vmem:[%s1 + $0x408] sm:$0xff]
    %v149 = vld [vmem:[%s1 + $0x410] sm:$0xff]
    %v150 = vld [vmem:[%s1 + $0x418] sm:$0xff]
    %v151 = vld [vmem:[%s1 + $0x420] sm:$0xff]
    %v152 = vld [vmem:[%s1 + $0x428] sm:$0xff]
    %v153 = vld [vmem:[%s1 + $0x430] sm:$0xff]
    %v154 = vld [vmem:[%s1 + $0x438] sm:$0xff]
    %v155 = vld [vmem:[%s1 + $0x440] sm:$0xff]
    %v156 = vld [vmem:[%s1 + $0x448] sm:$0xff]
    %v157 = vld [vmem:[%s1 + $0x450] sm:$0xff]
    %v158 = vld [vmem:[%s1 + $0x458] sm:$0xff]
    %v159 = vld [vmem:[%s1 + $0x460] sm:$0xff]
    %v160 = vld [vmem:[%s1 + $0x468] sm:$0xff]
    %v161 = vld [vmem:[%s1 + $0x470] sm:$0xff]
    %v162 = vld [vmem:[%s1 + $0x478] sm:$0xff]
    %v163 = vld [vmem:[%s1 + $0x480] sm:$0xff]
    %v164 = vld [vmem:[%s1 + $0x488] sm:$0xff]
    %v165 = vld [vmem:[%s1 + $0x490] sm:$0xff]
    %v166 = vld [vmem:[%s1 + $0x498] sm:$0xff]
    %v167 = vld [vmem:[%s1 + $0x4a0] sm:$0xff]
    %v168 = vld [vmem:[%s1 + $0x4a8] sm:$0xff]
    %v169 = vld [vmem:[%s1 + $0x4b0] sm:$0xff]
    %v170 = vld [vmem:[%s1 + $0x4b8] sm:$0xff]
    %v171 = vld [vmem:[%s1 + $0x4c0] sm:$0xff]
    %v172 = vld [vmem:[%s1 + $0x4c8] sm:$0xff]
    %v173 = vld [vmem:[%s1 + $0x4d0] sm:$0xff]
    %v174 = vld [vmem:[%s1 + $0x4d8] sm:$0xff]
    %v175 = vld [vmem:[%s1 + $0x4e0] sm:$0xff]
    %v176 = vld [vmem:[%s1 + $0x4e8] sm:$0xff]
    %v177 = vld [vmem:[%s1 + $0x4f0] sm:$0xff]
    %v178 = vld [vmem:[%s1 + $0x4f8] sm:$0xff]
    %v179 = vld [vmem:[%s1 + $0x500] sm:$0xff]
    %v180 = vld [vmem:[%s1 + $0x508] sm:$0xff]
    %v181 = vld [vmem:[%s1 + $0x510] sm:$0xff]
    %v182 = vld [vmem:[%s1 + $0x518] sm:$0xff]
    %v183 = vld [vmem:[%s1 + $0x520] sm:$0xff]
    %v184 = vld [vmem:[%s1 + $0x528] sm:$0xff]
    %v185 = vld [vmem:[%s1 + $0x530] sm:$0xff]
    %v186 = vld [vmem:[%s1 + $0x538] sm:$0xff]
    %v187 = vld [vmem:[%s1 + $0x540] sm:$0xff]
    %v188 = vld [vmem:[%s1 + $0x548] sm:$0xff]
    %v189 = vld [vmem:[%s1 + $0x550] sm:$0xff]
    %v190 = vld [vmem:[%s1 + $0x558] sm:$0xff]
    %v191 = vld [vmem:[%s1 + $0x560] sm:$0xff]
    %v192 = vld [vmem:[%s1 + $0x568] sm:$0xff]
    %v193 = vld [vmem:[%s1 + $0x570] sm:$0xff]
    %v194 = vld [vmem:[%s1 + $0x578] sm:$0xff]
    %v195 = vld [vmem:[%s1 + $0x580] sm:$0xff]
    %v196 = vld [vmem:[%s1 + $0x588] sm:$0xff]
    %v197 = vld [vmem:[%s1 + $0x590] sm:$0xff]
    %v198 = vld [vmem:[%s1 + $0x598] sm:$0xff]
    %v199 = vld [vmem:[%s1 + $0x5a0] sm:$0xff]
    %v200 = vld [vmem:[%s1 + $0x5a8] sm:$0xff]
    %v201 = vld [vmem:[%s1 + $0x5b0] sm:$0xff]
    %v202 = vld [vmem:[%s1 + $0x5b8] sm:$0xff]
    %v203 = vld [vmem:[%s1 + $0x5c0] sm:$0xff]
    %v204 = vld [vmem:[%s1 + $0x5c8] sm:$0xff]
    %v205 = vld [vmem:[%s1 + $0x5d0] sm:$0xff]
    %v206 = vld [vmem:[%s1 + $0x5d8] sm:$0xff]
    %v207 = vld [vmem:[%s1 + $0x5e0] sm:$0xff]
    %v208 = vld [vmem:[%s1 + $0x5e8] sm:$0xff]
    %v209 = vld [vmem:[%s1 + $0x5f0] sm:$0xff]
    %v210 = vld [vmem:[%s1 + $0x5f8] sm:$0xff]
    %v211 = vld [vmem:[%s1 + $0x600] sm:$0xff]
    %v212 = vld [vmem:[%s1 + $0x608] sm:$0xff]
    %v213 = vld [vmem:[%s1 + $0x610] sm:$0xff]
    %v214 = vld [vmem:[%s1 + $0x618] sm:$0xff]
    %v215 = vld [vmem:[%s1 + $0x620] sm:$0xff]
    %v216 = vld [vmem:[%s1 + $0x628] sm:$0xff]
    %v217 = vld [vmem:[%s1 + $0x630] sm:$0xff]
    %v218 = vld [vmem:[%s1 + $0x638] sm:$0xff]
    %v219 = vld [vmem:[%s1 + $0x640] sm:$0xff]
    %v220 = vld [vmem:[%s1 + $0x648] sm:$0xff]
    %v221 = vld [vmem:[%s1 + $0x650] sm:$0xff]
    %v222 = vld [vmem:[%s1 + $0x658] sm:$0xff]
    %v223 = vld [vmem:[%s1 + $0x660] sm:$0xff]
    %v224 = vld [vmem:[%s1 + $0x668] sm:$0xff]
    %v225 = vld [vmem:[%s1 + $0x670] sm:$0xff]
    %v226 = vld [vmem:[%s1 + $0x678] sm:$0xff]
    %v227 = vld [vmem:[%s1 + $0x680] sm:$0xff]
    %v228 = vld [vmem:[%s1 + $0x688] sm:$0xff]
    %v229 = vld [vmem:[%s1 + $0x690] sm:$0xff]
    %v230 = vld [vmem:[%s1 + $0x698] sm:$0xff]
    %v231 = vld [vmem:[%s1 + $0x6a0] sm:$0xff]
    %v232 = vld [vmem:[%s1 + $0x6a8] sm:$0xff]
    %v233 = vld [vmem:[%s1 + $0x6b0] sm:$0xff]
    %v234 = vld [vmem:[%s1 + $0x6b8] sm:$0xff]
    %v235 = vld [vmem:[%s1 + $0x6c0] sm:$0xff]
    %v236 = vld [vmem:[%s1 + $0x6c8] sm:$0xff]
    %v237 = vld [vmem:[%s1 + $0x6d0] sm:$0xff]
    %v238 = vld [vmem:[%s1 + $0x6d8] sm:$0xff]
    %v239 = vld [vmem:[%s1 + $0x6e0] sm:$0xff]
    %v240 = vld [vmem:[%s1 + $0x6e8] sm:$0xff]
    %v241 = vld [vmem:[%s1 + $0x6f0] sm:$0xff]
    %v242 = vld [vmem:[%s1 + $0x6f8] sm:$0xff]
    %v243 = vld [vmem:[%s1 + $0x700] sm:$0xff]
    %v244 = vld [vmem:[%s1 + $0x708] sm:$0xff]
    %v245 = vld [vmem:[%s1 + $0x710] sm:$0xff]
    %v246 = vld [vmem:[%s1 + $0x718] sm:$0xff]
    %v247 = vld [vmem:[%s1 + $0x720] sm:$0xff]
    %v248 = vld [vmem:[%s1 + $0x728] sm:$0xff]
    %v249 = vld [vmem:[%s1 + $0x730] sm:$0xff]
    %v250 = vld [vmem:[%s1 + $0x738] sm:$0xff]
    %v251 = vld [vmem:[%s1 + $0x740] sm:$0xff]
    %v252 = vld [vmem:[%s1 + $0x748] sm:$0xff]
    %v253 = vld [vmem:[%s1 + $0x750] sm:$0xff]
    %v254 = vld [vmem:[%s1 + $0x758] sm:$0xff]
    %v255 = vld [vmem:[%s1 + $0x760] sm:$0xff]
    %v256 = vld [vmem:[%s1 + $0x768] sm:$0xff]
    %v257 = vld [vmem:[%s1 + $0x770] sm:$0xff]
    %v258 = vld [vmem:[%s1 + $0x778] sm:$0xff]
    %v259 = vld [vmem:[%s1 + $0x780] sm:$0xff]
    %v260 = vld [vmem:[%s1 + $0x788] sm:$0xff]
    %v261 = vld [vmem:[%s1 + $0x790] sm:$0xff]
    %v262 = vld [vmem:[%s1 + $0x798] sm:$0xff]
    %v263 = vld [vmem:[%s1 + $0x7a0] sm:$0xff]
    %v264 = vld [vmem:[%s1 + $0x7a8] sm:$0xff]
    %v265 = vld [vmem:[%s1 + $0x7b0] sm:$0xff]
    %v266 = vld [vmem:[%s1 + $0x7b8] sm:$0xff]
    %v267 = vld [vmem:[%s1 + $0x7c0] sm:$0xff]
    %v268 = vld [vmem:[%s1 + $0x7c8] sm:$0xff]
    %v269 = vld [vmem:[%s1 + $0x7d0] sm:$0xff]
    %v270 = vld [vmem:[%s1 + $0x7d8] sm:$0xff]
    %v271 = vld [vmem:[%s1 + $0x7e0] sm:$0xff]
    %v272 = vld [vmem:[%s1 + $0x7e8] sm:$0xff]
    %v273 = vld [vmem:[%s1 + $0x7f0] sm:$0xff]
    %v274 = vld [vmem:[%s1 + $0x7f8] sm:$0xff]
    %v275 = vld [vmem:[%s2] sm:$0x1]
    %v277 = vlaneseq
    %v278 = vshrl.u32 %v277, 7
    %v279 = vsub.s32 0, %v278
    %v280 = vrot.slane %v275, %v279
    %v286 = vcombine.high %v15, %v15
    %v288 = vunpack.c.l.s4 1983009808
    %v289 = vunpack.c.0.s8 %v288
    %v290 = vlaneseq
    %v291 = vshrl.u32 %v290, 7
    %v292 = vsub.s32 %v289, %v291
    %v293 = vrot.slane %v15, %v292
    %v295 = vunpack.c.l.s4 1983009808
    %v296 = vunpack.c.0.s8 %v295
    %v297 = vlaneseq
    %v298 = vshrl.u32 %v297, 7
    %v299 = vsub.s32 %v296, %v298
    %v300 = vrot.slane %v286, %v299
    %v301 = vcombine.high %v293, %v293
    %v302 = vcombine.high %v300, %v300
    %v303 = vcombine.high %v16, %v16
    %v305 = vunpack.c.l.s4 1983009808
    %v306 = vunpack.c.0.s8 %v305
    %v307 = vlaneseq
    %v308 = vshrl.u32 %v307, 7
    %v309 = vsub.s32 %v306, %v308
    %v310 = vrot.slane %v16, %v309
    %v312 = vunpack.c.l.s4 1983009808
    %v313 = vunpack.c.0.s8 %v312
    %v314 = vlaneseq
    %v315 = vshrl.u32 %v314, 7
    %v316 = vsub.s32 %v313, %v315
    %v317 = vrot.slane %v303, %v316
    %v318 = vcombine.high %v310, %v310
    %v319 = vcombine.high %v317, %v317
    %v320 = vcombine.high %v17, %v17
    %v322 = vunpack.c.l.s4 1983009808
    %v323 = vunpack.c.0.s8 %v322
    %v324 = vlaneseq
    %v325 = vshrl.u32 %v324, 7
    %v326 = vsub.s32 %v323, %v325
    %v327 = vrot.slane %v17, %v326
    %v329 = vunpack.c.l.s4 1983009808
    %v330 = vunpack.c.0.s8 %v329
    %v331 = vlaneseq
    %v332 = vshrl.u32 %v331, 7
    %v333 = vsub.s32 %v330, %v332
    %v334 = vrot.slane %v320, %v333
    %v335 = vcombine.high %v327, %v327
    %v336 = vcombine.high %v334, %v334
    %v337 = vcombine.high %v18, %v18
    %v339 = vunpack.c.l.s4 1983009808
    %v340 = vunpack.c.0.s8 %v339
    %v341 = vlaneseq
    %v342 = vshrl.u32 %v341, 7
    %v343 = vsub.s32 %v340, %v342
    %v344 = vrot.slane %v18, %v343
    %v346 = vunpack.c.l.s4 1983009808
    %v347 = vunpack.c.0.s8 %v346
    %v348 = vlaneseq
    %v349 = vshrl.u32 %v348, 7
    %v350 = vsub.s32 %v347, %v349
    %v351 = vrot.slane %v337, %v350
    %v352 = vcombine.high %v344, %v344
    %v353 = vcombine.high %v351, %v351
    %370 = vmatprep.subr.mxu0 0.0
    %371 = vmatpush1.msra.mxu0 %v34
    %372 = vmatprep.subr.mxu0 0.0
    %373 = vmatpush1.msra.mxu0 %v33
    %374 = vmatprep.subr.mxu0 0.0
    %375 = vmatpush1.msra.mxu0 %v32
    %376 = vmatprep.subr.mxu0 0.0
    %377 = vmatpush1.msra.mxu0 %v31
    %378 = vmatprep.subr.mxu0 0.0
    %379 = vmatpush1.msra.mxu0 %v30
    %380 = vmatprep.subr.mxu0 0.0
    %381 = vmatpush1.msra.mxu0 %v29
    %382 = vmatprep.subr.mxu0 0.0
    %383 = vmatpush1.msra.mxu0 %v28
    %384 = vmatprep.subr.mxu0 0.0
    %385 = vmatpush1.msra.mxu0 %v27
    %386 = vmatprep.subr.mxu0 0.0
    %387 = vmatpush1.msra.mxu0 %v26
    %388 = vmatprep.subr.mxu0 0.0
    %389 = vmatpush1.msra.mxu0 %v25
    %390 = vmatprep.subr.mxu0 0.0
    %391 = vmatpush1.msra.mxu0 %v24
    %392 = vmatprep.subr.mxu0 0.0
    %393 = vmatpush1.msra.mxu0 %v23
    %394 = vmatprep.subr.mxu0 0.0
    %395 = vmatpush1.msra.mxu0 %v22
    %396 = vmatprep.subr.mxu0 0.0
    %397 = vmatpush1.msra.mxu0 %v21
    %398 = vmatprep.subr.mxu0 0.0
    %399 = vmatpush1.msra.mxu0 %v20
    %400 = vmatprep.subr.mxu0 0.0
    %401 = vmatpush1.msra.mxu0 %v19
    %402 = vmatprep.subr.mxu0 0.0
    %403 = vmatpush2.msra.mxu0 %v50
    %404 = vmatprep.subr.mxu0 0.0
    %405 = vmatpush2.msra.mxu0 %v49
    %406 = vmatprep.subr.mxu0 0.0
    %407 = vmatpush2.msra.mxu0 %v48
    %408 = vmatprep.subr.mxu0 0.0
    %409 = vmatpush2.msra.mxu0 %v47
    %410 = vmatprep.subr.mxu0 0.0
    %411 = vmatpush2.msra.mxu0 %v46
    %412 = vmatprep.subr.mxu0 0.0
    %413 = vmatpush2.msra.mxu0 %v45
    %414 = vmatprep.subr.mxu0 0.0
    %415 = vmatpush2.msra.mxu0 %v44
    %416 = vmatprep.subr.mxu0 0.0
    %417 = vmatpush2.msra.mxu0 %v43
    %418 = vmatprep.subr.mxu0 0.0
    %419 = vmatpush2.msra.mxu0 %v42
    %420 = vmatprep.subr.mxu0 0.0
    %421 = vmatpush2.msra.mxu0 %v41
    %422 = vmatprep.subr.mxu0 0.0
    %423 = vmatpush2.msra.mxu0 %v40
    %424 = vmatprep.subr.mxu0 0.0
    %425 = vmatpush2.msra.mxu0 %v39
    %426 = vmatprep.subr.mxu0 0.0
    %427 = vmatpush2.msra.mxu0 %v38
    %428 = vmatprep.subr.mxu0 0.0
    %429 = vmatpush2.msra.mxu0 %v37
    %430 = vmatprep.subr.mxu0 0.0
    %431 = vmatpush2.msra.mxu0 %v36
    %432 = vmatprep.subr.mxu0 0.0
    %433 = vmatpush2.msra.mxu0 %v35
    %434 = vmatprep.mubr.f32.mxu0 %v301
    %435 = vmatmul.mubr.f32.gmra.mxu0 %v293
    %v436 = vpop.f32.mrf.mxu0
    %v437 = vadd.f32 %v280, %v436
    %v438 = vpop.f32.mrf.mxu0
    %439 = vdwg.mxu0
    %440 = vmatprep.subr.mxu0 0.0
    %441 = vmatpush1.msra.mxu0 %v66
    %442 = vmatprep.subr.mxu0 0.0
    %443 = vmatpush1.msra.mxu0 %v65
    %444 = vmatprep.subr.mxu0 0.0
    %445 = vmatpush1.msra.mxu0 %v64
    %446 = vmatprep.subr.mxu0 0.0
    %447 = vmatpush1.msra.mxu0 %v63
    %448 = vmatprep.subr.mxu0 0.0
    %449 = vmatpush1.msra.mxu0 %v62
    %450 = vmatprep.subr.mxu0 0.0
    %451 = vmatpush1.msra.mxu0 %v61
    %452 = vmatprep.subr.mxu0 0.0
    %453 = vmatpush1.msra.mxu0 %v60
    %454 = vmatprep.subr.mxu0 0.0
    %455 = vmatpush1.msra.mxu0 %v59
    %456 = vmatprep.subr.mxu0 0.0
    %457 = vmatpush1.msra.mxu0 %v58
    %458 = vmatprep.subr.mxu0 0.0
    %459 = vmatpush1.msra.mxu0 %v57
    %460 = vmatprep.subr.mxu0 0.0
    %461 = vmatpush1.msra.mxu0 %v56
    %462 = vmatprep.subr.mxu0 0.0
    %463 = vmatpush1.msra.mxu0 %v55
    %464 = vmatprep.subr.mxu0 0.0
    %465 = vmatpush1.msra.mxu0 %v54
    %466 = vmatprep.subr.mxu0 0.0
    %467 = vmatpush1.msra.mxu0 %v53
    %468 = vmatprep.subr.mxu0 0.0
    %469 = vmatpush1.msra.mxu0 %v52
    %470 = vmatprep.subr.mxu0 0.0
    %471 = vmatpush1.msra.mxu0 %v51
    %472 = vmatprep.subr.mxu0 0.0
    %473 = vmatpush2.msra.mxu0 %v82
    %474 = vmatprep.subr.mxu0 0.0
    %475 = vmatpush2.msra.mxu0 %v81
    %476 = vmatprep.subr.mxu0 0.0
    %477 = vmatpush2.msra.mxu0 %v80
    %478 = vmatprep.subr.mxu0 0.0
    %479 = vmatpush2.msra.mxu0 %v79
    %480 = vmatprep.subr.mxu0 0.0
    %481 = vmatpush2.msra.mxu0 %v78
    %482 = vmatprep.subr.mxu0 0.0
    %483 = vmatpush2.msra.mxu0 %v77
    %484 = vmatprep.subr.mxu0 0.0
    %485 = vmatpush2.msra.mxu0 %v76
    %486 = vmatprep.subr.mxu0 0.0
    %487 = vmatpush2.msra.mxu0 %v75
    %488 = vmatprep.subr.mxu0 0.0
    %489 = vmatpush2.msra.mxu0 %v74
    %490 = vmatprep.subr.mxu0 0.0
    %491 = vmatpush2.msra.mxu0 %v73
    %492 = vmatprep.subr.mxu0 0.0
    %493 = vmatpush2.msra.mxu0 %v72
    %494 = vmatprep.subr.mxu0 0.0
    %495 = vmatpush2.msra.mxu0 %v71
    %496 = vmatprep.subr.mxu0 0.0
    %497 = vmatpush2.msra.mxu0 %v70
    %498 = vmatprep.subr.mxu0 0.0
    %499 = vmatpush2.msra.mxu0 %v69
    %500 = vmatprep.subr.mxu0 0.0
    %501 = vmatpush2.msra.mxu0 %v68
    %502 = vmatprep.subr.mxu0 0.0
    %503 = vmatpush2.msra.mxu0 %v67
    %504 = vmatprep.mubr.f32.mxu0 %v302
    %505 = vmatmul.mubr.f32.gmra.mxu0 %v300
    %v506 = vpop.f32.mrf.mxu0
    %v507 = vadd.f32 %v437, %v506
    %v508 = vpop.f32.mrf.mxu0
    %509 = vdwg.mxu0
    %510 = vmatprep.subr.mxu0 0.0
    %511 = vmatpush1.msra.mxu0 %v98
    %512 = vmatprep.subr.mxu0 0.0
    %513 = vmatpush1.msra.mxu0 %v97
    %514 = vmatprep.subr.mxu0 0.0
    %515 = vmatpush1.msra.mxu0 %v96
    %516 = vmatprep.subr.mxu0 0.0
    %517 = vmatpush1.msra.mxu0 %v95
    %518 = vmatprep.subr.mxu0 0.0
    %519 = vmatpush1.msra.mxu0 %v94
    %520 = vmatprep.subr.mxu0 0.0
    %521 = vmatpush1.msra.mxu0 %v93
    %522 = vmatprep.subr.mxu0 0.0
    %523 = vmatpush1.msra.mxu0 %v92
    %524 = vmatprep.subr.mxu0 0.0
    %525 = vmatpush1.msra.mxu0 %v91
    %526 = vmatprep.subr.mxu0 0.0
    %527 = vmatpush1.msra.mxu0 %v90
    %528 = vmatprep.subr.mxu0 0.0
    %529 = vmatpush1.msra.mxu0 %v89
    %530 = vmatprep.subr.mxu0 0.0
    %531 = vmatpush1.msra.mxu0 %v88
    %532 = vmatprep.subr.mxu0 0.0
    %533 = vmatpush1.msra.mxu0 %v87
    %534 = vmatprep.subr.mxu0 0.0
    %535 = vmatpush1.msra.mxu0 %v86
    %536 = vmatprep.subr.mxu0 0.0
    %537 = vmatpush1.msra.mxu0 %v85
    %538 = vmatprep.subr.mxu0 0.0
    %539 = vmatpush1.msra.mxu0 %v84
    %540 = vmatprep.subr.mxu0 0.0
    %541 = vmatpush1.msra.mxu0 %v83
    %542 = vmatprep.subr.mxu0 0.0
    %543 = vmatpush2.msra.mxu0 %v114
    %544 = vmatprep.subr.mxu0 0.0
    %545 = vmatpush2.msra.mxu0 %v113
    %546 = vmatprep.subr.mxu0 0.0
    %547 = vmatpush2.msra.mxu0 %v112
    %548 = vmatprep.subr.mxu0 0.0
    %549 = vmatpush2.msra.mxu0 %v111
    %550 = vmatprep.subr.mxu0 0.0
    %551 = vmatpush2.msra.mxu0 %v110
    %552 = vmatprep.subr.mxu0 0.0
    %553 = vmatpush2.msra.mxu0 %v109
    %554 = vmatprep.subr.mxu0 0.0
    %555 = vmatpush2.msra.mxu0 %v108
    %556 = vmatprep.subr.mxu0 0.0
    %557 = vmatpush2.msra.mxu0 %v107
    %558 = vmatprep.subr.mxu0 0.0
    %559 = vmatpush2.msra.mxu0 %v106
    %560 = vmatprep.subr.mxu0 0.0
    %561 = vmatpush2.msra.mxu0 %v105
    %562 = vmatprep.subr.mxu0 0.0
    %563 = vmatpush2.msra.mxu0 %v104
    %564 = vmatprep.subr.mxu0 0.0
    %565 = vmatpush2.msra.mxu0 %v103
    %566 = vmatprep.subr.mxu0 0.0
    %567 = vmatpush2.msra.mxu0 %v102
    %568 = vmatprep.subr.mxu0 0.0
    %569 = vmatpush2.msra.mxu0 %v101
    %570 = vmatprep.subr.mxu0 0.0
    %571 = vmatpush2.msra.mxu0 %v100
    %572 = vmatprep.subr.mxu0 0.0
    %573 = vmatpush2.msra.mxu0 %v99
    %574 = vmatprep.mubr.f32.mxu0 %v318
    %575 = vmatmul.mubr.f32.gmra.mxu0 %v310
    %v576 = vpop.f32.mrf.mxu0
    %v577 = vadd.f32 %v507, %v576
    %v578 = vpop.f32.mrf.mxu0
    %579 = vdwg.mxu0
    %580 = vmatprep.subr.mxu0 0.0
    %581 = vmatpush1.msra.mxu0 %v130
    %582 = vmatprep.subr.mxu0 0.0
    %583 = vmatpush1.msra.mxu0 %v129
    %584 = vmatprep.subr.mxu0 0.0
    %585 = vmatpush1.msra.mxu0 %v128
    %586 = vmatprep.subr.mxu0 0.0
    %587 = vmatpush1.msra.mxu0 %v127
    %588 = vmatprep.subr.mxu0 0.0
    %589 = vmatpush1.msra.mxu0 %v126
    %590 = vmatprep.subr.mxu0 0.0
    %591 = vmatpush1.msra.mxu0 %v125
    %592 = vmatprep.subr.mxu0 0.0
    %593 = vmatpush1.msra.mxu0 %v124
    %594 = vmatprep.subr.mxu0 0.0
    %595 = vmatpush1.msra.mxu0 %v123
    %596 = vmatprep.subr.mxu0 0.0
    %597 = vmatpush1.msra.mxu0 %v122
    %598 = vmatprep.subr.mxu0 0.0
    %599 = vmatpush1.msra.mxu0 %v121
    %600 = vmatprep.subr.mxu0 0.0
    %601 = vmatpush1.msra.mxu0 %v120
    %602 = vmatprep.subr.mxu0 0.0
    %603 = vmatpush1.msra.mxu0 %v119
    %604 = vmatprep.subr.mxu0 0.0
    %605 = vmatpush1.msra.mxu0 %v118
    %606 = vmatprep.subr.mxu0 0.0
    %607 = vmatpush1.msra.mxu0 %v117
    %608 = vmatprep.subr.mxu0 0.0
    %609 = vmatpush1.msra.mxu0 %v116
    %610 = vmatprep.subr.mxu0 0.0
    %611 = vmatpush1.msra.mxu0 %v115
    %612 = vmatprep.subr.mxu0 0.0
    %613 = vmatpush2.msra.mxu0 %v146
    %614 = vmatprep.subr.mxu0 0.0
    %615 = vmatpush2.msra.mxu0 %v145
    %616 = vmatprep.subr.mxu0 0.0
    %617 = vmatpush2.msra.mxu0 %v144
    %618 = vmatprep.subr.mxu0 0.0
    %619 = vmatpush2.msra.mxu0 %v143
    %620 = vmatprep.subr.mxu0 0.0
    %621 = vmatpush2.msra.mxu0 %v142
    %622 = vmatprep.subr.mxu0 0.0
    %623 = vmatpush2.msra.mxu0 %v141
    %624 = vmatprep.subr.mxu0 0.0
    %625 = vmatpush2.msra.mxu0 %v140
    %626 = vmatprep.subr.mxu0 0.0
    %627 = vmatpush2.msra.mxu0 %v139
    %628 = vmatprep.subr.mxu0 0.0
    %629 = vmatpush2.msra.mxu0 %v138
    %630 = vmatprep.subr.mxu0 0.0
    %631 = vmatpush2.msra.mxu0 %v137
    %632 = vmatprep.subr.mxu0 0.0
    %633 = vmatpush2.msra.mxu0 %v136
    %634 = vmatprep.subr.mxu0 0.0
    %635 = vmatpush2.msra.mxu0 %v135
    %636 = vmatprep.subr.mxu0 0.0
    %637 = vmatpush2.msra.mxu0 %v134
    %638 = vmatprep.subr.mxu0 0.0
    %639 = vmatpush2.msra.mxu0 %v133
    %640 = vmatprep.subr.mxu0 0.0
    %641 = vmatpush2.msra.mxu0 %v132
    %642 = vmatprep.subr.mxu0 0.0
    %643 = vmatpush2.msra.mxu0 %v131
    %644 = vmatprep.mubr.f32.mxu0 %v319
    %645 = vmatmul.mubr.f32.gmra.mxu0 %v317
    %v646 = vpop.f32.mrf.mxu0
    %v647 = vadd.f32 %v577, %v646
    %v648 = vpop.f32.mrf.mxu0
    %649 = vdwg.mxu0
    %650 = vmatprep.subr.mxu0 0.0
    %651 = vmatpush1.msra.mxu0 %v162
    %652 = vmatprep.subr.mxu0 0.0
    %653 = vmatpush1.msra.mxu0 %v161
    %654 = vmatprep.subr.mxu0 0.0
    %655 = vmatpush1.msra.mxu0 %v160
    %656 = vmatprep.subr.mxu0 0.0
    %657 = vmatpush1.msra.mxu0 %v159
    %658 = vmatprep.subr.mxu0 0.0
    %659 = vmatpush1.msra.mxu0 %v158
    %660 = vmatprep.subr.mxu0 0.0
    %661 = vmatpush1.msra.mxu0 %v157
    %662 = vmatprep.subr.mxu0 0.0
    %663 = vmatpush1.msra.mxu0 %v156
    %664 = vmatprep.subr.mxu0 0.0
    %665 = vmatpush1.msra.mxu0 %v155
    %666 = vmatprep.subr.mxu0 0.0
    %667 = vmatpush1.msra.mxu0 %v154
    %668 = vmatprep.subr.mxu0 0.0
    %669 = vmatpush1.msra.mxu0 %v153
    %670 = vmatprep.subr.mxu0 0.0
    %671 = vmatpush1.msra.mxu0 %v152
    %672 = vmatprep.subr.mxu0 0.0
    %673 = vmatpush1.msra.mxu0 %v151
    %674 = vmatprep.subr.mxu0 0.0
    %675 = vmatpush1.msra.mxu0 %v150
    %676 = vmatprep.subr.mxu0 0.0
    %677 = vmatpush1.msra.mxu0 %v149
    %678 = vmatprep.subr.mxu0 0.0
    %679 = vmatpush1.msra.mxu0 %v148
    %680 = vmatprep.subr.mxu0 0.0
    %681 = vmatpush1.msra.mxu0 %v147
    %682 = vmatprep.subr.mxu0 0.0
    %683 = vmatpush2.msra.mxu0 %v178
    %684 = vmatprep.subr.mxu0 0.0
    %685 = vmatpush2.msra.mxu0 %v177
    %686 = vmatprep.subr.mxu0 0.0
    %687 = vmatpush2.msra.mxu0 %v176
    %688 = vmatprep.subr.mxu0 0.0
    %689 = vmatpush2.msra.mxu0 %v175
    %690 = vmatprep.subr.mxu0 0.0
    %691 = vmatpush2.msra.mxu0 %v174
    %692 = vmatprep.subr.mxu0 0.0
    %693 = vmatpush2.msra.mxu0 %v173
    %694 = vmatprep.subr.mxu0 0.0
    %695 = vmatpush2.msra.mxu0 %v172
    %696 = vmatprep.subr.mxu0 0.0
    %697 = vmatpush2.msra.mxu0 %v171
    %698 = vmatprep.subr.mxu0 0.0
    %699 = vmatpush2.msra.mxu0 %v170
    %700 = vmatprep.subr.mxu0 0.0
    %701 = vmatpush2.msra.mxu0 %v169
    %702 = vmatprep.subr.mxu0 0.0
    %703 = vmatpush2.msra.mxu0 %v168
    %704 = vmatprep.subr.mxu0 0.0
    %705 = vmatpush2.msra.mxu0 %v167
    %706 = vmatprep.subr.mxu0 0.0
    %707 = vmatpush2.msra.mxu0 %v166
    %708 = vmatprep.subr.mxu0 0.0
    %709 = vmatpush2.msra.mxu0 %v165
    %710 = vmatprep.subr.mxu0 0.0
    %711 = vmatpush2.msra.mxu0 %v164
    %712 = vmatprep.subr.mxu0 0.0
    %713 = vmatpush2.msra.mxu0 %v163
    %714 = vmatprep.mubr.f32.mxu0 %v335
    %715 = vmatmul.mubr.f32.gmra.mxu0 %v327
    %v716 = vpop.f32.mrf.mxu0
    %v717 = vadd.f32 %v647, %v716
    %v718 = vpop.f32.mrf.mxu0
    %719 = vdwg.mxu0
    %720 = vmatprep.subr.mxu0 0.0
    %721 = vmatpush1.msra.mxu0 %v194
    %722 = vmatprep.subr.mxu0 0.0
    %723 = vmatpush1.msra.mxu0 %v193
    %724 = vmatprep.subr.mxu0 0.0
    %725 = vmatpush1.msra.mxu0 %v192
    %726 = vmatprep.subr.mxu0 0.0
    %727 = vmatpush1.msra.mxu0 %v191
    %728 = vmatprep.subr.mxu0 0.0
    %729 = vmatpush1.msra.mxu0 %v190
    %730 = vmatprep.subr.mxu0 0.0
    %731 = vmatpush1.msra.mxu0 %v189
    %732 = vmatprep.subr.mxu0 0.0
    %733 = vmatpush1.msra.mxu0 %v188
    %734 = vmatprep.subr.mxu0 0.0
    %735 = vmatpush1.msra.mxu0 %v187
    %736 = vmatprep.subr.mxu0 0.0
    %737 = vmatpush1.msra.mxu0 %v186
    %738 = vmatprep.subr.mxu0 0.0
    %739 = vmatpush1.msra.mxu0 %v185
    %740 = vmatprep.subr.mxu0 0.0
    %741 = vmatpush1.msra.mxu0 %v184
    %742 = vmatprep.subr.mxu0 0.0
    %743 = vmatpush1.msra.mxu0 %v183
    %744 = vmatprep.subr.mxu0 0.0
    %745 = vmatpush1.msra.mxu0 %v182
    %746 = vmatprep.subr.mxu0 0.0
    %747 = vmatpush1.msra.mxu0 %v181
    %748 = vmatprep.subr.mxu0 0.0
    %749 = vmatpush1.msra.mxu0 %v180
    %750 = vmatprep.subr.mxu0 0.0
    %751 = vmatpush1.msra.mxu0 %v179
    %752 = vmatprep.subr.mxu0 0.0
    %753 = vmatpush2.msra.mxu0 %v210
    %754 = vmatprep.subr.mxu0 0.0
    %755 = vmatpush2.msra.mxu0 %v209
    %756 = vmatprep.subr.mxu0 0.0
    %757 = vmatpush2.msra.mxu0 %v208
    %758 = vmatprep.subr.mxu0 0.0
    %759 = vmatpush2.msra.mxu0 %v207
    %760 = vmatprep.subr.mxu0 0.0
    %761 = vmatpush2.msra.mxu0 %v206
    %762 = vmatprep.subr.mxu0 0.0
    %763 = vmatpush2.msra.mxu0 %v205
    %764 = vmatprep.subr.mxu0 0.0
    %765 = vmatpush2.msra.mxu0 %v204
    %766 = vmatprep.subr.mxu0 0.0
    %767 = vmatpush2.msra.mxu0 %v203
    %768 = vmatprep.subr.mxu0 0.0
    %769 = vmatpush2.msra.mxu0 %v202
    %770 = vmatprep.subr.mxu0 0.0
    %771 = vmatpush2.msra.mxu0 %v201
    %772 = vmatprep.subr.mxu0 0.0
    %773 = vmatpush2.msra.mxu0 %v200
    %774 = vmatprep.subr.mxu0 0.0
    %775 = vmatpush2.msra.mxu0 %v199
    %776 = vmatprep.subr.mxu0 0.0
    %777 = vmatpush2.msra.mxu0 %v198
    %778 = vmatprep.subr.mxu0 0.0
    %779 = vmatpush2.msra.mxu0 %v197
    %780 = vmatprep.subr.mxu0 0.0
    %781 = vmatpush2.msra.mxu0 %v196
    %782 = vmatprep.subr.mxu0 0.0
    %783 = vmatpush2.msra.mxu0 %v195
    %784 = vmatprep.mubr.f32.mxu0 %v336
    %785 = vmatmul.mubr.f32.gmra.mxu0 %v334
    %v786 = vpop.f32.mrf.mxu0
    %v787 = vadd.f32 %v717, %v786
    %v788 = vpop.f32.mrf.mxu0
    %789 = vdwg.mxu0
    %790 = vmatprep.subr.mxu0 0.0
    %791 = vmatpush1.msra.mxu0 %v226
    %792 = vmatprep.subr.mxu0 0.0
    %793 = vmatpush1.msra.mxu0 %v225
    %794 = vmatprep.subr.mxu0 0.0
    %795 = vmatpush1.msra.mxu0 %v224
    %796 = vmatprep.subr.mxu0 0.0
    %797 = vmatpush1.msra.mxu0 %v223
    %798 = vmatprep.subr.mxu0 0.0
    %799 = vmatpush1.msra.mxu0 %v222
    %800 = vmatprep.subr.mxu0 0.0
    %801 = vmatpush1.msra.mxu0 %v221
    %802 = vmatprep.subr.mxu0 0.0
    %803 = vmatpush1.msra.mxu0 %v220
    %804 = vmatprep.subr.mxu0 0.0
    %805 = vmatpush1.msra.mxu0 %v219
    %806 = vmatprep.subr.mxu0 0.0
    %807 = vmatpush1.msra.mxu0 %v218
    %808 = vmatprep.subr.mxu0 0.0
    %809 = vmatpush1.msra.mxu0 %v217
    %810 = vmatprep.subr.mxu0 0.0
    %811 = vmatpush1.msra.mxu0 %v216
    %812 = vmatprep.subr.mxu0 0.0
    %813 = vmatpush1.msra.mxu0 %v215
    %814 = vmatprep.subr.mxu0 0.0
    %815 = vmatpush1.msra.mxu0 %v214
    %816 = vmatprep.subr.mxu0 0.0
    %817 = vmatpush1.msra.mxu0 %v213
    %818 = vmatprep.subr.mxu0 0.0
    %819 = vmatpush1.msra.mxu0 %v212
    %820 = vmatprep.subr.mxu0 0.0
    %821 = vmatpush1.msra.mxu0 %v211
    %822 = vmatprep.subr.mxu0 0.0
    %823 = vmatpush2.msra.mxu0 %v242
    %824 = vmatprep.subr.mxu0 0.0
    %825 = vmatpush2.msra.mxu0 %v241
    %826 = vmatprep.subr.mxu0 0.0
    %827 = vmatpush2.msra.mxu0 %v240
    %828 = vmatprep.subr.mxu0 0.0
    %829 = vmatpush2.msra.mxu0 %v239
    %830 = vmatprep.subr.mxu0 0.0
    %831 = vmatpush2.msra.mxu0 %v238
    %832 = vmatprep.subr.mxu0 0.0
    %833 = vmatpush2.msra.mxu0 %v237
    %834 = vmatprep.subr.mxu0 0.0
    %835 = vmatpush2.msra.mxu0 %v236
    %836 = vmatprep.subr.mxu0 0.0
    %837 = vmatpush2.msra.mxu0 %v235
    %838 = vmatprep.subr.mxu0 0.0
    %839 = vmatpush2.msra.mxu0 %v234
    %840 = vmatprep.subr.mxu0 0.0
    %841 = vmatpush2.msra.mxu0 %v233
    %842 = vmatprep.subr.mxu0 0.0
    %843 = vmatpush2.msra.mxu0 %v232
    %844 = vmatprep.subr.mxu0 0.0
    %845 = vmatpush2.msra.mxu0 %v231
    %846 = vmatprep.subr.mxu0 0.0
    %847 = vmatpush2.msra.mxu0 %v230
    %848 = vmatprep.subr.mxu0 0.0
    %849 = vmatpush2.msra.mxu0 %v229
    %850 = vmatprep.subr.mxu0 0.0
    %851 = vmatpush2.msra.mxu0 %v228
    %852 = vmatprep.subr.mxu0 0.0
    %853 = vmatpush2.msra.mxu0 %v227
    %854 = vmatprep.mubr.f32.mxu0 %v352
    %855 = vmatmul.mubr.f32.gmra.mxu0 %v344
    %v856 = vpop.f32.mrf.mxu0
    %v857 = vadd.f32 %v787, %v856
    %v858 = vpop.f32.mrf.mxu0
    %859 = vdwg.mxu0
    %860 = vmatprep.subr.mxu0 0.0
    %861 = vmatpush1.msra.mxu0 %v258
    %862 = vmatprep.subr.mxu0 0.0
    %863 = vmatpush1.msra.mxu0 %v257
    %864 = vmatprep.subr.mxu0 0.0
    %865 = vmatpush1.msra.mxu0 %v256
    %866 = vmatprep.subr.mxu0 0.0
    %867 = vmatpush1.msra.mxu0 %v255
    %868 = vmatprep.subr.mxu0 0.0
    %869 = vmatpush1.msra.mxu0 %v254
    %870 = vmatprep.subr.mxu0 0.0
    %871 = vmatpush1.msra.mxu0 %v253
    %872 = vmatprep.subr.mxu0 0.0
    %873 = vmatpush1.msra.mxu0 %v252
    %874 = vmatprep.subr.mxu0 0.0
    %875 = vmatpush1.msra.mxu0 %v251
    %876 = vmatprep.subr.mxu0 0.0
    %877 = vmatpush1.msra.mxu0 %v250
    %878 = vmatprep.subr.mxu0 0.0
    %879 = vmatpush1.msra.mxu0 %v249
    %880 = vmatprep.subr.mxu0 0.0
    %881 = vmatpush1.msra.mxu0 %v248
    %882 = vmatprep.subr.mxu0 0.0
    %883 = vmatpush1.msra.mxu0 %v247
    %884 = vmatprep.subr.mxu0 0.0
    %885 = vmatpush1.msra.mxu0 %v246
    %886 = vmatprep.subr.mxu0 0.0
    %887 = vmatpush1.msra.mxu0 %v245
    %888 = vmatprep.subr.mxu0 0.0
    %889 = vmatpush1.msra.mxu0 %v244
    %890 = vmatprep.subr.mxu0 0.0
    %891 = vmatpush1.msra.mxu0 %v243
    %892 = vmatprep.subr.mxu0 0.0
    %893 = vmatpush2.msra.mxu0 %v274
    %894 = vmatprep.subr.mxu0 0.0
    %895 = vmatpush2.msra.mxu0 %v273
    %896 = vmatprep.subr.mxu0 0.0
    %897 = vmatpush2.msra.mxu0 %v272
    %898 = vmatprep.subr.mxu0 0.0
    %899 = vmatpush2.msra.mxu0 %v271
    %900 = vmatprep.subr.mxu0 0.0
    %901 = vmatpush2.msra.mxu0 %v270
    %902 = vmatprep.subr.mxu0 0.0
    %903 = vmatpush2.msra.mxu0 %v269
    %904 = vmatprep.subr.mxu0 0.0
    %905 = vmatpush2.msra.mxu0 %v268
    %906 = vmatprep.subr.mxu0 0.0
    %907 = vmatpush2.msra.mxu0 %v267
    %908 = vmatprep.subr.mxu0 0.0
    %909 = vmatpush2.msra.mxu0 %v266
    %910 = vmatprep.subr.mxu0 0.0
    %911 = vmatpush2.msra.mxu0 %v265
    %912 = vmatprep.subr.mxu0 0.0
    %913 = vmatpush2.msra.mxu0 %v264
    %914 = vmatprep.subr.mxu0 0.0
    %915 = vmatpush2.msra.mxu0 %v263
    %916 = vmatprep.subr.mxu0 0.0
    %917 = vmatpush2.msra.mxu0 %v262
    %918 = vmatprep.subr.mxu0 0.0
    %919 = vmatpush2.msra.mxu0 %v261
    %920 = vmatprep.subr.mxu0 0.0
    %921 = vmatpush2.msra.mxu0 %v260
    %922 = vmatprep.subr.mxu0 0.0
    %923 = vmatpush2.msra.mxu0 %v259
    %924 = vmatprep.mubr.f32.mxu0 %v353
    %925 = vmatmul.mubr.f32.gmra.mxu0 %v351
    %v926 = vpop.f32.mrf.mxu0
    %v927 = vadd.f32 %v857, %v926
    %v928 = vpop.f32.mrf.mxu0
    %929 = vdwg.mxu0
    %930 = vst [vmem:[#allocation2] sm:$0x3] %v927
    // Predicated region
    $region14: #{net_forward.5} parent=1 // pred_check
      _
    $region15: #{net_forward.5} parent=1 // pred_check_branch
      %932 = sbr.rel (0) target = $region17
    $region16: #{net_forward.5} parent=1 // pred_region
      %s934 = ssub.s32 32, 32
      %935 = vsyncadd [#allocation3], %s934
      %s937 = sshll.u32 [#allocation2], 4
      %s938 = int_to_ptr.vmem [resolvable:$true] %s937
      %940 = dma.vmem_to_hbm [thread:$0]  %s938, 32, %s3, [#allocation3]
    $region17: #{net_forward.5} parent=1 // pred_fallthru
      _
    // Predicated region
    $region18: #{net_forward.5} parent=1 // pred_check
      _
    $region19: #{net_forward.5} parent=1 // pred_check_branch
      %942 = sbr.rel (0) target = $region21
    $region20: #{net_forward.5} parent=1 // pred_region
      %943 = dma.done [#allocation3], 32
    $region21: #{net_forward.5} parent=1 // pred_fallthru
      _
    %944 = vsyncpa [#allocation3], 1

</llo_original>
